<compile_context>
chip_gen: v7x
topology: tpu7x:2x2x1
jax: 0.10.0
libtpu: 0.0.40
codegen_flags: <defaults>
</compile_context>

<pallas_src>
import functools

import jax
import jax.numpy as jnp
from jax import lax
from jax.experimental import pallas as pl
from jax.experimental.pallas import tpu as pltpu

C_IN = 6        # conv0 input channels
F_DIM = 32      # conv0 output / conv1 input channels
_CHUNK = 512    # lanes processed per fused conv0+conv1 chunk inside the kernel
_ALIGN = 512    # row tiles kept as multiples of the chunk size (128-lane safe)

# dot dims for W[f, c] x X[c, t] -> [f, t]  (plain NN contraction, no transpose)
_NN_DIMS = (((1,), (0,)), ((), ()))


def _d_transformation_kernel(x_ref, p_ref, b1_ref, o_ref):
    # x_ref:  (6, T)   channel-major tile of input rows (lane-dense in HBM)
    # p_ref:  (32, 8)  packed params: [:, 0:6]=w0t, [:, 6:7]=b0, [:, 7:8]=w1
    # b1_ref: (1, 1)   conv1 bias
    # o_ref:  (1, T)   lane-dense output tile
    w0t = p_ref[:, 0:C_IN]              # (32, 6)
    b0 = p_ref[:, C_IN:C_IN + 1]        # (32, 1)
    w1 = p_ref[:, C_IN + 1:C_IN + 2]    # (32, 1)
    b1 = b1_ref[...]                    # (1, 1)

    t = x_ref.shape[1]
    n_chunks = t // _CHUNK              # static (block shape is static)

    def body(j, carry):
        c0 = pl.multiple_of(j * _CHUNK, _CHUNK)
        xc = x_ref[:, pl.ds(c0, _CHUNK)]                            # (6, CHUNK)
        # conv0 (1x1) == linear 6 -> 32, channels-major -> (32, CHUNK) on MXU
        h = lax.dot_general(w0t, xc, _NN_DIMS,
                            preferred_element_type=jnp.float32)
        h = jnp.maximum(h + b0, 0.0)                                # bias + ReLU
        # conv1 (1x1) == linear 32 -> 1: VPU multiply + sublane reduce,
        # fused into the epilogue so the full (32, T) h is never materialized.
        z = jnp.sum(h * w1, axis=0, keepdims=True) + b1             # (1, CHUNK)
        o_ref[:, pl.ds(c0, _CHUNK)] = jax.nn.sigmoid(z)             # lane-dense store
        return carry

    lax.fori_loop(0, n_chunks, body, None, unroll=True)


def _round_up(x, m):
    return ((x + m - 1) // m) * m


@functools.partial(jax.jit, static_argnames=("row_tile",))
def d_transformation_forward(x, w0t, b0, w1, b1, *, row_tile=16384):
    """x: any shape with total elements divisible by 6 (matches torch reshape)."""
    # torch reshape semantics: consecutive groups of 6 flat elements are one row.
    x_flat = x.reshape(-1, C_IN).astype(jnp.float32)     # [N, 6]
    n = x_flat.shape[0]
    # One-time relayout to a lane-dense, channel-major slab for the kernel.
    x_cm = x_flat.T                                       # [6, N]

    # Packed params: one small resident VMEM block instead of three.
    params = jnp.concatenate(
        [w0t.astype(jnp.float32),
         b0.reshape(F_DIM, 1).astype(jnp.float32),
         w1.reshape(F_DIM, 1).astype(jnp.float32)], axis=1)          # (32, 8)
    b1v = b1.reshape(1, 1).astype(jnp.float32)

    # Tile: big enough to amortize the ~0.35 us/step cost, multiple of the
    # in-kernel chunk, and capped at ceil(n/2) so the grid has >= 2 parallel
    # steps whenever n allows it (keeps both v7x TensorCores busy).
    # VMEM: double-buffered (8-sublane-padded) input tile = 2*8*t*4 B -> 1 MiB
    # at t=16384; safe under every generation's scoped VMEM default.
    t = max(_ALIGN, min(_round_up(row_tile, _ALIGN),
                        _round_up(pl.cdiv(n, 2), _ALIGN)))
    grid = (pl.cdiv(n, t),)   # no wrapper-side pad: Pallas clips the ragged tail

    out = pl.pallas_call(
        _d_transformation_kernel,
        out_shape=jax.ShapeDtypeStruct((1, n), jnp.float32),
        grid_spec=pltpu.PrefetchScalarGridSpec(
            num_scalar_prefetch=0,
            grid=grid,
            in_specs=[
                pl.BlockSpec((C_IN, t), lambda i: (0, i)),   # dense channel-major read
                pl.BlockSpec((F_DIM, 8), lambda i: (0, 0)),  # packed params, resident
                pl.BlockSpec((1, 1), lambda i: (0, 0)),      # b1
            ],
            out_specs=pl.BlockSpec((1, t), lambda i: (0, i)),  # lane-dense store
        ),
        compiler_params=pltpu.CompilerParams(
            dimension_semantics=("parallel",)),
    )(x_cm, params, b1v)

    # [1, N] -> [N, 1, 1, 1] to match the PyTorch Conv2d output layout.
    return out.reshape(n, 1, 1, 1)


def init_params(key):
    """Deterministic parameter init (shapes match nn.Conv2d weights, squeezed)."""
    k0, k1, k2, k3 = jax.random.split(key, 4)
    # conv0: weight (32, 6, 1, 1) -> (32, 6) == (out_ch, in_ch)
    bound0 = 1.0 / jnp.sqrt(C_IN)
    w0t = jax.random.uniform(k0, (F_DIM, C_IN), jnp.float32, -bound0, bound0)
    b0 = jax.random.uniform(k1, (F_DIM, 1), jnp.float32, -bound0, bound0)
    # conv1: weight (1, 32, 1, 1) -> stored as column (32, 1)
    bound1 = 1.0 / jnp.sqrt(F_DIM)
    w1 = jax.random.uniform(k2, (F_DIM, 1), jnp.float32, -bound1, bound1)
    b1 = jax.random.uniform(k3, (1, 1), jnp.float32, -bound1, bound1)
    return w0t, b0, w1, b1


def reference_forward(x, w0t, b0, w1, b1):
    """Plain-JAX reference of the PyTorch forward for validation."""
    xf = x.reshape(-1, C_IN).astype(jnp.float32)
    h = jnp.maximum(xf @ w0t.T + b0.reshape(1, F_DIM), 0.0)
    z = h @ w1 + b1.reshape(1, 1)
    return jax.nn.sigmoid(z).reshape(-1, 1, 1, 1)


if __name__ == "__main__":
    key = jax.random.PRNGKey(0)
    kx, kx2, kp = jax.random.split(key, 3)
    w0t, b0, w1, b1 = init_params(kp)

    # NCHW input with 6 channels: reshape([-1, 6, 1, 1]) gives N = 2*64*64 = 8192
    # rows -> t = 4096, a 2-step parallel grid (both v7x cores busy).
    x = jax.random.normal(kx, (2, 6, 64, 64), jnp.float32)
    out = jax.block_until_ready(d_transformation_forward(x, w0t, b0, w1, b1))
    ref = reference_forward(x, w0t, b0, w1, b1)
    assert out.shape == (2 * 64 * 64, 1, 1, 1), out.shape
    assert jnp.allclose(out, ref, atol=5e-5, rtol=5e-5), "mismatch vs reference"

    # Ragged-N check (n = 777: not a multiple of the tile or of 128) to confirm
    # the clipped tail block never leaks garbage columns into the output.
    x2 = jax.random.normal(kx2, (777 * C_IN,), jnp.float32)
    out2 = jax.block_until_ready(d_transformation_forward(x2, w0t, b0, w1, b1))
    ref2 = reference_forward(x2, w0t, b0, w1, b1)
    assert out2.shape == (777, 1, 1, 1), out2.shape
    assert jnp.allclose(out2, ref2, atol=5e-5, rtol=5e-5), "ragged mismatch vs reference"

    print("KERNEL_OK")
</pallas_src>

<mosaic_0001>
module attributes {stable_mosaic.version = 11 : i64} {
  func.func @_d_transformation_kernel(%arg0: i32, %arg1: memref<6x4096xf32, #tpu.memory_space<vmem>>, %arg2: memref<32x8xf32, #tpu.memory_space<vmem>>, %arg3: memref<1x1xf32, #tpu.memory_space<vmem>>, %arg4: memref<1x4096xf32, #tpu.memory_space<vmem>>) attributes {dimension_semantics = [#tpu.dimension_semantics<parallel>], iteration_bounds = array<i64: 2>, scalar_prefetch = 0 : i64, scratch_operands = 0 : i64, tpu.core_type = #tpu.core_type<tc>, window_params = [{transform_indices = @transform_0, window_bounds = array<i64: 6, 4096>}, {pipeline_mode = #tpu.pipeline_mode<synchronous>, transform_indices = @transform_1, window_bounds = array<i64: 32, 8>}, {pipeline_mode = #tpu.pipeline_mode<synchronous>, transform_indices = @transform_2, window_bounds = array<i64: 1, 1>}, {transform_indices = @transform_3, window_bounds = array<i64: 1, 4096>}]} {
    %c0 = arith.constant 0 : index
    %c0_0 = arith.constant 0 : index
    %0 = vector.load %arg2[%c0, %c0_0] : memref<32x8xf32, #tpu.memory_space<vmem>>, vector<32x6xf32>
    %c0_1 = arith.constant 0 : index
    %c6 = arith.constant 6 : index
    %1 = vector.load %arg2[%c0_1, %c6] : memref<32x8xf32, #tpu.memory_space<vmem>>, vector<32x1xf32>
    %c0_2 = arith.constant 0 : index
    %c7 = arith.constant 7 : index
    %2 = vector.load %arg2[%c0_2, %c7] : memref<32x8xf32, #tpu.memory_space<vmem>>, vector<32x1xf32>
    %c0_3 = arith.constant 0 : index
    %c0_4 = arith.constant 0 : index
    %3 = vector.load %arg3[%c0_3, %c0_4] : memref<1x1xf32, #tpu.memory_space<vmem>>, vector<1x1xf32>
    %c0_i32 = arith.constant 0 : i32
    %c512_i32 = arith.constant 512 : i32
    %4 = arith.muli %c0_i32, %c512_i32 : i32
    %5 = tpu.assume_multiple %4, 512 : i32
    %c0_5 = arith.constant 0 : index
    %6 = arith.index_cast %5 : i32 to index
    %7 = vector.load %arg1[%c0_5, %6] : memref<6x4096xf32, #tpu.memory_space<vmem>>, vector<6x512xf32>
    %cst = arith.constant dense<0.000000e+00> : vector<32x512xf32>
    %8 = tpu.matmul %0, %7, %cst {dimension_numbers = #tpu.dot_dimension_numbers<[1], [0], [0], [1], [0, 0, 1, 1], [], []>} : vector<32x6xf32>, vector<6x512xf32>, vector<32x512xf32> -> vector<32x512xf32>
    %9 = vector.broadcast %1 : vector<32x1xf32> to vector<32x512xf32>
    %10 = arith.addf %8, %9 : vector<32x512xf32>
    %cst_6 = arith.constant 0.000000e+00 : f32
    %11 = vector.broadcast %cst_6 : f32 to vector<32x512xf32>
    %12 = arith.maximumf %10, %11 : vector<32x512xf32>
    %13 = vector.broadcast %2 : vector<32x1xf32> to vector<32x512xf32>
    %14 = arith.mulf %12, %13 : vector<32x512xf32>
    %cst_7 = arith.constant dense<0.000000e+00> : vector<512xf32>
    %15 = vector.multi_reduction <add>, %14, %cst_7 [0] : vector<32x512xf32> to vector<512xf32>
    %16 = vector.shape_cast %15 : vector<512xf32> to vector<1x512xf32>
    %17 = vector.broadcast %3 : vector<1x1xf32> to vector<1x512xf32>
    %18 = arith.addf %16, %17 : vector<1x512xf32>
    %19 = arith.negf %18 : vector<1x512xf32>
    %20 = math.exp %19 : vector<1x512xf32>
    %cst_8 = arith.constant 1.000000e+00 : f32
    %21 = vector.broadcast %cst_8 : f32 to vector<1x512xf32>
    %22 = arith.addf %21, %20 : vector<1x512xf32>
    %23 = arith.divf %21, %22 : vector<1x512xf32>
    %c0_9 = arith.constant 0 : index
    %24 = arith.index_cast %5 : i32 to index
    %25 = vector.load %arg4[%c0_9, %24] : memref<1x4096xf32, #tpu.memory_space<vmem>>, vector<1x512xf32>
    tpu.vector_store %arg4[%c0_9, %24], %23 {strides = array<i32>} : memref<1x4096xf32, #tpu.memory_space<vmem>>, vector<1x512xf32>,
    %c1_i32 = arith.constant 1 : i32
    %c512_i32_10 = arith.constant 512 : i32
    %26 = arith.muli %c1_i32, %c512_i32_10 : i32
    %27 = tpu.assume_multiple %26, 512 : i32
    %c0_11 = arith.constant 0 : index
    %28 = arith.index_cast %27 : i32 to index
    %29 = vector.load %arg1[%c0_11, %28] : memref<6x4096xf32, #tpu.memory_space<vmem>>, vector<6x512xf32>
    %cst_12 = arith.constant dense<0.000000e+00> : vector<32x512xf32>
    %30 = tpu.matmul %0, %29, %cst_12 {dimension_numbers = #tpu.dot_dimension_numbers<[1], [0], [0], [1], [0, 0, 1, 1], [], []>} : vector<32x6xf32>, vector<6x512xf32>, vector<32x512xf32> -> vector<32x512xf32>
    %31 = vector.broadcast %1 : vector<32x1xf32> to vector<32x512xf32>
    %32 = arith.addf %30, %31 : vector<32x512xf32>
    %cst_13 = arith.constant 0.000000e+00 : f32
    %33 = vector.broadcast %cst_13 : f32 to vector<32x512xf32>
    %34 = arith.maximumf %32, %33 : vector<32x512xf32>
    %35 = vector.broadcast %2 : vector<32x1xf32> to vector<32x512xf32>
    %36 = arith.mulf %34, %35 : vector<32x512xf32>
    %cst_14 = arith.constant dense<0.000000e+00> : vector<512xf32>
    %37 = vector.multi_reduction <add>, %36, %cst_14 [0] : vector<32x512xf32> to vector<512xf32>
    %38 = vector.shape_cast %37 : vector<512xf32> to vector<1x512xf32>
    %39 = vector.broadcast %3 : vector<1x1xf32> to vector<1x512xf32>
    %40 = arith.addf %38, %39 : vector<1x512xf32>
    %41 = arith.negf %40 : vector<1x512xf32>
    %42 = math.exp %41 : vector<1x512xf32>
    %cst_15 = arith.constant 1.000000e+00 : f32
    %43 = vector.broadcast %cst_15 : f32 to vector<1x512xf32>
    %44 = arith.addf %43, %42 : vector<1x512xf32>
    %45 = arith.divf %43, %44 : vector<1x512xf32>
    %c0_16 = arith.constant 0 : index
    %46 = arith.index_cast %27 : i32 to index
    %47 = vector.load %arg4[%c0_16, %46] : memref<1x4096xf32, #tpu.memory_space<vmem>>, vector<1x512xf32>
    tpu.vector_store %arg4[%c0_16, %46], %45 {strides = array<i32>} : memref<1x4096xf32, #tpu.memory_space<vmem>>, vector<1x512xf32>,
    %c2_i32 = arith.constant 2 : i32
    %c512_i32_17 = arith.constant 512 : i32
    %48 = arith.muli %c2_i32, %c512_i32_17 : i32
    %49 = tpu.assume_multiple %48, 512 : i32
    %c0_18 = arith.constant 0 : index
    %50 = arith.index_cast %49 : i32 to index
    %51 = vector.load %arg1[%c0_18, %50] : memref<6x4096xf32, #tpu.memory_space<vmem>>, vector<6x512xf32>
    %cst_19 = arith.constant dense<0.000000e+00> : vector<32x512xf32>
    %52 = tpu.matmul %0, %51, %cst_19 {dimension_numbers = #tpu.dot_dimension_numbers<[1], [0], [0], [1], [0, 0, 1, 1], [], []>} : vector<32x6xf32>, vector<6x512xf32>, vector<32x512xf32> -> vector<32x512xf32>
    %53 = vector.broadcast %1 : vector<32x1xf32> to vector<32x512xf32>
    %54 = arith.addf %52, %53 : vector<32x512xf32>
    %cst_20 = arith.constant 0.000000e+00 : f32
    %55 = vector.broadcast %cst_20 : f32 to vector<32x512xf32>
    %56 = arith.maximumf %54, %55 : vector<32x512xf32>
    %57 = vector.broadcast %2 : vector<32x1xf32> to vector<32x512xf32>
    %58 = arith.mulf %56, %57 : vector<32x512xf32>
    %cst_21 = arith.constant dense<0.000000e+00> : vector<512xf32>
    %59 = vector.multi_reduction <add>, %58, %cst_21 [0] : vector<32x512xf32> to vector<512xf32>
    %60 = vector.shape_cast %59 : vector<512xf32> to vector<1x512xf32>
    %61 = vector.broadcast %3 : vector<1x1xf32> to vector<1x512xf32>
    %62 = arith.addf %60, %61 : vector<1x512xf32>
    %63 = arith.negf %62 : vector<1x512xf32>
    %64 = math.exp %63 : vector<1x512xf32>
    %cst_22 = arith.constant 1.000000e+00 : f32
    %65 = vector.broadcast %cst_22 : f32 to vector<1x512xf32>
    %66 = arith.addf %65, %64 : vector<1x512xf32>
    %67 = arith.divf %65, %66 : vector<1x512xf32>
    %c0_23 = arith.constant 0 : index
    %68 = arith.index_cast %49 : i32 to index
    %69 = vector.load %arg4[%c0_23, %68] : memref<1x4096xf32, #tpu.memory_space<vmem>>, vector<1x512xf32>
    tpu.vector_store %arg4[%c0_23, %68], %67 {strides = array<i32>} : memref<1x4096xf32, #tpu.memory_space<vmem>>, vector<1x512xf32>,
    %c3_i32 = arith.constant 3 : i32
    %c512_i32_24 = arith.constant 512 : i32
    %70 = arith.muli %c3_i32, %c512_i32_24 : i32
    %71 = tpu.assume_multiple %70, 512 : i32
    %c0_25 = arith.constant 0 : index
    %72 = arith.index_cast %71 : i32 to index
    %73 = vector.load %arg1[%c0_25, %72] : memref<6x4096xf32, #tpu.memory_space<vmem>>, vector<6x512xf32>
    %cst_26 = arith.constant dense<0.000000e+00> : vector<32x512xf32>
    %74 = tpu.matmul %0, %73, %cst_26 {dimension_numbers = #tpu.dot_dimension_numbers<[1], [0], [0], [1], [0, 0, 1, 1], [], []>} : vector<32x6xf32>, vector<6x512xf32>, vector<32x512xf32> -> vector<32x512xf32>
    %75 = vector.broadcast %1 : vector<32x1xf32> to vector<32x512xf32>
    %76 = arith.addf %74, %75 : vector<32x512xf32>
    %cst_27 = arith.constant 0.000000e+00 : f32
    %77 = vector.broadcast %cst_27 : f32 to vector<32x512xf32>
    %78 = arith.maximumf %76, %77 : vector<32x512xf32>
    %79 = vector.broadcast %2 : vector<32x1xf32> to vector<32x512xf32>
    %80 = arith.mulf %78, %79 : vector<32x512xf32>
    %cst_28 = arith.constant dense<0.000000e+00> : vector<512xf32>
    %81 = vector.multi_reduction <add>, %80, %cst_28 [0] : vector<32x512xf32> to vector<512xf32>
    %82 = vector.shape_cast %81 : vector<512xf32> to vector<1x512xf32>
    %83 = vector.broadcast %3 : vector<1x1xf32> to vector<1x512xf32>
    %84 = arith.addf %82, %83 : vector<1x512xf32>
    %85 = arith.negf %84 : vector<1x512xf32>
    %86 = math.exp %85 : vector<1x512xf32>
    %cst_29 = arith.constant 1.000000e+00 : f32
    %87 = vector.broadcast %cst_29 : f32 to vector<1x512xf32>
    %88 = arith.addf %87, %86 : vector<1x512xf32>
    %89 = arith.divf %87, %88 : vector<1x512xf32>
    %c0_30 = arith.constant 0 : index
    %90 = arith.index_cast %71 : i32 to index
    %91 = vector.load %arg4[%c0_30, %90] : memref<1x4096xf32, #tpu.memory_space<vmem>>, vector<1x512xf32>
    tpu.vector_store %arg4[%c0_30, %90], %89 {strides = array<i32>} : memref<1x4096xf32, #tpu.memory_space<vmem>>, vector<1x512xf32>,
    %c4_i32 = arith.constant 4 : i32
    %c512_i32_31 = arith.constant 512 : i32
    %92 = arith.muli %c4_i32, %c512_i32_31 : i32
    %93 = tpu.assume_multiple %92, 512 : i32
    %c0_32 = arith.constant 0 : index
    %94 = arith.index_cast %93 : i32 to index
    %95 = vector.load %arg1[%c0_32, %94] : memref<6x4096xf32, #tpu.memory_space<vmem>>, vector<6x512xf32>
    %cst_33 = arith.constant dense<0.000000e+00> : vector<32x512xf32>
    %96 = tpu.matmul %0, %95, %cst_33 {dimension_numbers = #tpu.dot_dimension_numbers<[1], [0], [0], [1], [0, 0, 1, 1], [], []>} : vector<32x6xf32>, vector<6x512xf32>, vector<32x512xf32> -> vector<32x512xf32>
    %97 = vector.broadcast %1 : vector<32x1xf32> to vector<32x512xf32>
    %98 = arith.addf %96, %97 : vector<32x512xf32>
    %cst_34 = arith.constant 0.000000e+00 : f32
    %99 = vector.broadcast %cst_34 : f32 to vector<32x512xf32>
    %100 = arith.maximumf %98, %99 : vector<32x512xf32>
    %101 = vector.broadcast %2 : vector<32x1xf32> to vector<32x512xf32>
    %102 = arith.mulf %100, %101 : vector<32x512xf32>
    %cst_35 = arith.constant dense<0.000000e+00> : vector<512xf32>
    %103 = vector.multi_reduction <add>, %102, %cst_35 [0] : vector<32x512xf32> to vector<512xf32>
    %104 = vector.shape_cast %103 : vector<512xf32> to vector<1x512xf32>
    %105 = vector.broadcast %3 : vector<1x1xf32> to vector<1x512xf32>
    %106 = arith.addf %104, %105 : vector<1x512xf32>
    %107 = arith.negf %106 : vector<1x512xf32>
    %108 = math.exp %107 : vector<1x512xf32>
    %cst_36 = arith.constant 1.000000e+00 : f32
    %109 = vector.broadcast %cst_36 : f32 to vector<1x512xf32>
    %110 = arith.addf %109, %108 : vector<1x512xf32>
    %111 = arith.divf %109, %110 : vector<1x512xf32>
    %c0_37 = arith.constant 0 : index
    %112 = arith.index_cast %93 : i32 to index
    %113 = vector.load %arg4[%c0_37, %112] : memref<1x4096xf32, #tpu.memory_space<vmem>>, vector<1x512xf32>
    tpu.vector_store %arg4[%c0_37, %112], %111 {strides = array<i32>} : memref<1x4096xf32, #tpu.memory_space<vmem>>, vector<1x512xf32>,
    %c5_i32 = arith.constant 5 : i32
    %c512_i32_38 = arith.constant 512 : i32
    %114 = arith.muli %c5_i32, %c512_i32_38 : i32
    %115 = tpu.assume_multiple %114, 512 : i32
    %c0_39 = arith.constant 0 : index
    %116 = arith.index_cast %115 : i32 to index
    %117 = vector.load %arg1[%c0_39, %116] : memref<6x4096xf32, #tpu.memory_space<vmem>>, vector<6x512xf32>
    %cst_40 = arith.constant dense<0.000000e+00> : vector<32x512xf32>
    %118 = tpu.matmul %0, %117, %cst_40 {dimension_numbers = #tpu.dot_dimension_numbers<[1], [0], [0], [1], [0, 0, 1, 1], [], []>} : vector<32x6xf32>, vector<6x512xf32>, vector<32x512xf32> -> vector<32x512xf32>
    %119 = vector.broadcast %1 : vector<32x1xf32> to vector<32x512xf32>
    %120 = arith.addf %118, %119 : vector<32x512xf32>
    %cst_41 = arith.constant 0.000000e+00 : f32
    %121 = vector.broadcast %cst_41 : f32 to vector<32x512xf32>
    %122 = arith.maximumf %120, %121 : vector<32x512xf32>
    %123 = vector.broadcast %2 : vector<32x1xf32> to vector<32x512xf32>
    %124 = arith.mulf %122, %123 : vector<32x512xf32>
    %cst_42 = arith.constant dense<0.000000e+00> : vector<512xf32>
    %125 = vector.multi_reduction <add>, %124, %cst_42 [0] : vector<32x512xf32> to vector<512xf32>
    %126 = vector.shape_cast %125 : vector<512xf32> to vector<1x512xf32>
    %127 = vector.broadcast %3 : vector<1x1xf32> to vector<1x512xf32>
    %128 = arith.addf %126, %127 : vector<1x512xf32>
    %129 = arith.negf %128 : vector<1x512xf32>
    %130 = math.exp %129 : vector<1x512xf32>
    %cst_43 = arith.constant 1.000000e+00 : f32
    %131 = vector.broadcast %cst_43 : f32 to vector<1x512xf32>
    %132 = arith.addf %131, %130 : vector<1x512xf32>
    %133 = arith.divf %131, %132 : vector<1x512xf32>
    %c0_44 = arith.constant 0 : index
    %134 = arith.index_cast %115 : i32 to index
    %135 = vector.load %arg4[%c0_44, %134] : memref<1x4096xf32, #tpu.memory_space<vmem>>, vector<1x512xf32>
    tpu.vector_store %arg4[%c0_44, %134], %133 {strides = array<i32>} : memref<1x4096xf32, #tpu.memory_space<vmem>>, vector<1x512xf32>,
    %c6_i32 = arith.constant 6 : i32
    %c512_i32_45 = arith.constant 512 : i32
    %136 = arith.muli %c6_i32, %c512_i32_45 : i32
    %137 = tpu.assume_multiple %136, 512 : i32
    %c0_46 = arith.constant 0 : index
    %138 = arith.index_cast %137 : i32 to index
    %139 = vector.load %arg1[%c0_46, %138] : memref<6x4096xf32, #tpu.memory_space<vmem>>, vector<6x512xf32>
    %cst_47 = arith.constant dense<0.000000e+00> : vector<32x512xf32>
    %140 = tpu.matmul %0, %139, %cst_47 {dimension_numbers = #tpu.dot_dimension_numbers<[1], [0], [0], [1], [0, 0, 1, 1], [], []>} : vector<32x6xf32>, vector<6x512xf32>, vector<32x512xf32> -> vector<32x512xf32>
    %141 = vector.broadcast %1 : vector<32x1xf32> to vector<32x512xf32>
    %142 = arith.addf %140, %141 : vector<32x512xf32>
    %cst_48 = arith.constant 0.000000e+00 : f32
    %143 = vector.broadcast %cst_48 : f32 to vector<32x512xf32>
    %144 = arith.maximumf %142, %143 : vector<32x512xf32>
    %145 = vector.broadcast %2 : vector<32x1xf32> to vector<32x512xf32>
    %146 = arith.mulf %144, %145 : vector<32x512xf32>
    %cst_49 = arith.constant dense<0.000000e+00> : vector<512xf32>
    %147 = vector.multi_reduction <add>, %146, %cst_49 [0] : vector<32x512xf32> to vector<512xf32>
    %148 = vector.shape_cast %147 : vector<512xf32> to vector<1x512xf32>
    %149 = vector.broadcast %3 : vector<1x1xf32> to vector<1x512xf32>
    %150 = arith.addf %148, %149 : vector<1x512xf32>
    %151 = arith.negf %150 : vector<1x512xf32>
    %152 = math.exp %151 : vector<1x512xf32>
    %cst_50 = arith.constant 1.000000e+00 : f32
    %153 = vector.broadcast %cst_50 : f32 to vector<1x512xf32>
    %154 = arith.addf %153, %152 : vector<1x512xf32>
    %155 = arith.divf %153, %154 : vector<1x512xf32>
    %c0_51 = arith.constant 0 : index
    %156 = arith.index_cast %137 : i32 to index
    %157 = vector.load %arg4[%c0_51, %156] : memref<1x4096xf32, #tpu.memory_space<vmem>>, vector<1x512xf32>
    tpu.vector_store %arg4[%c0_51, %156], %155 {strides = array<i32>} : memref<1x4096xf32, #tpu.memory_space<vmem>>, vector<1x512xf32>,
    %c7_i32 = arith.constant 7 : i32
    %c512_i32_52 = arith.constant 512 : i32
    %158 = arith.muli %c7_i32, %c512_i32_52 : i32
    %159 = tpu.assume_multiple %158, 512 : i32
    %c0_53 = arith.constant 0 : index
    %160 = arith.index_cast %159 : i32 to index
    %161 = vector.load %arg1[%c0_53, %160] : memref<6x4096xf32, #tpu.memory_space<vmem>>, vector<6x512xf32>
    %cst_54 = arith.constant dense<0.000000e+00> : vector<32x512xf32>
    %162 = tpu.matmul %0, %161, %cst_54 {dimension_numbers = #tpu.dot_dimension_numbers<[1], [0], [0], [1], [0, 0, 1, 1], [], []>} : vector<32x6xf32>, vector<6x512xf32>, vector<32x512xf32> -> vector<32x512xf32>
    %163 = vector.broadcast %1 : vector<32x1xf32> to vector<32x512xf32>
    %164 = arith.addf %162, %163 : vector<32x512xf32>
    %cst_55 = arith.constant 0.000000e+00 : f32
    %165 = vector.broadcast %cst_55 : f32 to vector<32x512xf32>
    %166 = arith.maximumf %164, %165 : vector<32x512xf32>
    %167 = vector.broadcast %2 : vector<32x1xf32> to vector<32x512xf32>
    %168 = arith.mulf %166, %167 : vector<32x512xf32>
    %cst_56 = arith.constant dense<0.000000e+00> : vector<512xf32>
    %169 = vector.multi_reduction <add>, %168, %cst_56 [0] : vector<32x512xf32> to vector<512xf32>
    %170 = vector.shape_cast %169 : vector<512xf32> to vector<1x512xf32>
    %171 = vector.broadcast %3 : vector<1x1xf32> to vector<1x512xf32>
    %172 = arith.addf %170, %171 : vector<1x512xf32>
    %173 = arith.negf %172 : vector<1x512xf32>
    %174 = math.exp %173 : vector<1x512xf32>
    %cst_57 = arith.constant 1.000000e+00 : f32
    %175 = vector.broadcast %cst_57 : f32 to vector<1x512xf32>
    %176 = arith.addf %175, %174 : vector<1x512xf32>
    %177 = arith.divf %175, %176 : vector<1x512xf32>
    %c0_58 = arith.constant 0 : index
    %178 = arith.index_cast %159 : i32 to index
    %179 = vector.load %arg4[%c0_58, %178] : memref<1x4096xf32, #tpu.memory_space<vmem>>, vector<1x512xf32>
    tpu.vector_store %arg4[%c0_58, %178], %177 {strides = array<i32>} : memref<1x4096xf32, #tpu.memory_space<vmem>>, vector<1x512xf32>,
    %c8_i32 = arith.constant 8 : i32
    return
  }
  func.func @transform_0(%arg0: i32) -> (i32, i32) {
    %c0_i32 = arith.constant 0 : i32
    %c0_i32_0 = arith.constant 0 : i32
    return %c0_i32, %arg0 : i32, i32
  }
  func.func @transform_1(%arg0: i32) -> (i32, i32) {
    %c0_i32 = arith.constant 0 : i32
    %c0_i32_0 = arith.constant 0 : i32
    %c0_i32_1 = arith.constant 0 : i32
    return %c0_i32, %c0_i32_0 : i32, i32
  }
  func.func @transform_2(%arg0: i32) -> (i32, i32) {
    %c0_i32 = arith.constant 0 : i32
    %c0_i32_0 = arith.constant 0 : i32
    %c0_i32_1 = arith.constant 0 : i32
    return %c0_i32, %c0_i32_0 : i32, i32
  }
  func.func @transform_3(%arg0: i32) -> (i32, i32) {
    %c0_i32 = arith.constant 0 : i32
    %c0_i32_0 = arith.constant 0 : i32
    return %c0_i32, %arg0 : i32, i32
  }
}

</mosaic_0001>

<llo_original>
// kernel: d_transformation_forward.1
$region0: #{d_transformation_forward.1}
  #allocation0 [shape = 'u32[]', space=smem, size = 0x4, offset = 0x4, fixed_abs, tag = 'smem constant byte address 0x4 - core index']
  #allocation1 [shape = 'u32[144,128]{1,0:T(1,128)}', space=vmem, size = 0x12000, scoped, tag = 'internal scratch']
  #allocation2 [shape = 'f32[1,1]{1,0:T(1,128)S(1)}', space=vmem, size = 0x200, scoped, tag = 'scoped memory for d_transformation_forward.1']
  %s0 = inlined_call_operand.vmem [shape: f32[6,8192], index: 0, kind: input, shape index: {}]
  %s1 = inlined_call_operand.vmem [shape: f32[32,8], index: 1, kind: input, shape index: {}]
  %s2 = inlined_call_operand.<no memory space> [shape: f32[1,1], index: 2, kind: input, shape index: {}]
  %s3 = inlined_call_operand.hbm [shape: f32[1,8192], index: 3, kind: output, shape index: {}]
  %s4 = sld [smem:[#allocation0]]
  $region45: #{d_transformation_forward.1} parent=0
    _
  %s6 = ssub.s32 1, %s4
  %s7 = scalar_select 0, %s6, %s4
  %v8 = vstv %s2
  %9 = vst [vmem:[#allocation2] sm:$0x1] %v8
  $region1: #{d_transformation_forward.1} parent=0
    #allocation3 [shape = 'u8[32768]{0}', space=vmem, size = 0x8000, scoped, tag = 'output window, operand 0']
    #allocation4 [shape = 's32[2]{0}', space=sflag, size = 0x8, scoped, tag = 'scoped memory for d_transformation_forward.1']
    %10 = vsyncpa [#allocation4], 0
    %s11 = scalar_lea.sflag [#allocation4], 1
    %12 = vsyncpa %s11, 0
    loop: start=0, step=1, limit=4
    $region2: #{d_transformation_forward.1} parent=1 // loop_pre_header
      _
    $region3: #{d_transformation_forward.1} parent=1 // loop_header
      %s14 = sphi 0, %s18
      %p15 = scmp.ge.s32.totalorder %s14, 4
      %s24 = sphi 0, %s26
      %s27 = sphi 0, %s24
      %s28 = sphi 0, %s27
      %s44 = sphi 0, %s28
      %s48 = sphi 0, %s48
      %s50 = sphi 0, %s48
      %s51 = sphi 0, %s50
      %s65 = sphi 0, %s51
      %s69 = sphi 0, %s69
      %s71 = sphi 0, %s69
      %s72 = sphi 0, %s71
      %s86 = sphi 0, %s72
      %s92 = sphi 0, %s94
      %s95 = sphi 0, %s92
      %s96 = sphi 0, %s95
      %s112 = sphi 0, %s96
    $region4: #{d_transformation_forward.1} parent=1 // loop_header_branch
      %17 = sbr.rel (%p15) target = $region8
    $region5: #{d_transformation_forward.1} parent=1 // loop_body
      %s19 = ssub.s32 %s14, 1
      %s20 = ssub.s32 %s14, 2
      %s21 = sadd.s32 %s14, 1
      %s22 = ssub.s32 %s14, %s21
      %p23 = scmp.eq.s32.totalorder %s22, 0
      %s25 = sadd.s32 %s24, 1
      %s26 = scalar_select %p23, %s24, %s25
      %p29 = pneg %p23
      %p30 = scmp.eq.s32.totalorder %s14, 1
      %p31 = por %p29, %p30
      %p32 = scmp.ne.s32.totalorder %s24, %s27
      %p33 = scmp.eq.s32.totalorder %s14, 0
      %p34 = por %p32, %p33
      %p35 = scmp.ne.s32.totalorder %s24, %s27
      %p36 = scmp.eq.s32.totalorder %s19, 1
      %p37 = por %p35, %p36
      %p38 = scmp.ne.s32.totalorder %s27, %s28
      %p39 = scmp.eq.s32.totalorder %s19, 0
      %p40 = por %p38, %p39
      %p41 = scmp.ne.s32.totalorder %s27, %s28
      %p42 = scmp.eq.s32.totalorder %s20, 1
      %p43 = por %p41, %p42
      %p45 = scmp.ne.s32.totalorder %s28, %s44
      %p46 = scmp.eq.s32.totalorder %s20, 0
      %p47 = por %p45, %p46
      %s49 = sadd.s32 %s48, 1
      %p52 = scmp.eq.s32.totalorder %s14, 1
      %p53 = scmp.ne.s32.totalorder %s48, %s50
      %p54 = scmp.eq.s32.totalorder %s14, 0
      %p55 = por %p53, %p54
      %p56 = scmp.ne.s32.totalorder %s48, %s50
      %p57 = scmp.eq.s32.totalorder %s19, 1
      %p58 = por %p56, %p57
      %p59 = scmp.ne.s32.totalorder %s50, %s51
      %p60 = scmp.eq.s32.totalorder %s19, 0
      %p61 = por %p59, %p60
      %p62 = scmp.ne.s32.totalorder %s50, %s51
      %p63 = scmp.eq.s32.totalorder %s20, 1
      %p64 = por %p62, %p63
      %p66 = scmp.ne.s32.totalorder %s51, %s65
      %p67 = scmp.eq.s32.totalorder %s20, 0
      %p68 = por %p66, %p67
      %s70 = sadd.s32 %s69, 1
      %p73 = scmp.eq.s32.totalorder %s14, 1
      %p74 = scmp.ne.s32.totalorder %s69, %s71
      %p75 = scmp.eq.s32.totalorder %s14, 0
      %p76 = por %p74, %p75
      %p77 = scmp.ne.s32.totalorder %s69, %s71
      %p78 = scmp.eq.s32.totalorder %s19, 1
      %p79 = por %p77, %p78
      %p80 = scmp.ne.s32.totalorder %s71, %s72
      %p81 = scmp.eq.s32.totalorder %s19, 0
      %p82 = por %p80, %p81
      %p83 = scmp.ne.s32.totalorder %s71, %s72
      %p84 = scmp.eq.s32.totalorder %s20, 1
      %p85 = por %p83, %p84
      %p87 = scmp.ne.s32.totalorder %s72, %s86
      %p88 = scmp.eq.s32.totalorder %s20, 0
      %p89 = por %p87, %p88
      %s90 = ssub.s32 %s14, %s21
      %p91 = scmp.eq.s32.totalorder %s90, 0
      %s93 = sadd.s32 %s92, 1
      %s94 = scalar_select %p91, %s92, %s93
      %p97 = pneg %p91
      %p98 = scmp.eq.s32.totalorder %s14, 1
      %p99 = por %p97, %p98
      %p100 = scmp.ne.s32.totalorder %s92, %s95
      %p101 = scmp.eq.s32.totalorder %s14, 0
      %p102 = por %p100, %p101
      %p103 = scmp.ne.s32.totalorder %s92, %s95
      %p104 = scmp.eq.s32.totalorder %s19, 1
      %p105 = por %p103, %p104
      %p106 = scmp.ne.s32.totalorder %s95, %s96
      %p107 = scmp.eq.s32.totalorder %s19, 0
      %p108 = por %p106, %p107
      %p109 = scmp.ne.s32.totalorder %s95, %s96
      %p110 = scmp.eq.s32.totalorder %s20, 1
      %p111 = por %p109, %p110
      %p113 = scmp.ne.s32.totalorder %s96, %s112
      %p114 = scmp.eq.s32.totalorder %s20, 0
      %p115 = por %p113, %p114
      %p116 = scmp.le.s32.totalorder 1, %s14
      %p117 = scmp.lt.s32.totalorder %s14, 3
      %p118 = pnand %p116, %p117
      %p119 = pneg %p118
      // Predicated region
      $region9: #{d_transformation_forward.1} parent=5 // pred_check
        _
      $region10: #{d_transformation_forward.1} parent=5 // pred_check_branch
        %121 = sbr.rel (%p118) target = $region12
      $region11: #{d_transformation_forward.1} parent=5 // pred_region
        %s122 = ssub.s32 %s14, 1
        // Predicated region
        $region13: #{d_transformation_forward.1} parent=11 // pred_check
          %p123 = pneg %p61
        $region14: #{d_transformation_forward.1} parent=11 // pred_check_branch
          %125 = sbr.rel (%p123) target = $region16
        $region15: #{d_transformation_forward.1} parent=11 // pred_region
          _
        $region16: #{d_transformation_forward.1} parent=11 // pred_fallthru
          _
        // Predicated region
        $region17: #{d_transformation_forward.1} parent=11 // pred_check
          %p126 = pneg %p82
        $region18: #{d_transformation_forward.1} parent=11 // pred_check_branch
          %128 = sbr.rel (%p126) target = $region20
        $region19: #{d_transformation_forward.1} parent=11 // pred_region
          _
        $region20: #{d_transformation_forward.1} parent=11 // pred_fallthru
          _
      $region12: #{d_transformation_forward.1} parent=5 // pred_fallthru
        _
      %p129 = scmp.lt.s32.totalorder %s14, 2
      // Predicated region
      $region21: #{d_transformation_forward.1} parent=5 // pred_check
        %p130 = pneg %p129
      $region22: #{d_transformation_forward.1} parent=5 // pred_check_branch
        %132 = sbr.rel (%p130) target = $region24
      $region23: #{d_transformation_forward.1} parent=5 // pred_region
        // Predicated region
        $region25: #{d_transformation_forward.1} parent=23 // pred_check
          %p133 = pneg %p34
        $region26: #{d_transformation_forward.1} parent=23 // pred_check_branch
          %135 = sbr.rel (%p133) target = $region28
        $region27: #{d_transformation_forward.1} parent=23 // pred_region
          %s136 = smul.u32 32, %s14
          %p137 = scmp.lt.s32.totalorder %s136, 63
          %s138 = scalar_select %p137, %s136, 63
          %s139 = smul.addr %s138, 8
          %s140 = scalar_lea.vmem %s0, %s139
          %s141 = smul.u32 32, %s14
        $region28: #{d_transformation_forward.1} parent=23 // pred_fallthru
          _
      $region24: #{d_transformation_forward.1} parent=5 // pred_fallthru
        _
      %p142 = scmp.le.s32.totalorder 1, %s14
      %p143 = scmp.lt.s32.totalorder %s14, 3
      %p144 = pnand %p142, %p143
      %p145 = pneg %p144
      // Predicated region
      $region29: #{d_transformation_forward.1} parent=5 // pred_check
        _
      $region30: #{d_transformation_forward.1} parent=5 // pred_check_branch
        %147 = sbr.rel (%p144) target = $region32
      $region31: #{d_transformation_forward.1} parent=5 // pred_region
        %s148 = ssub.s32 %s14, 1
        %s149 = smul.u32 32, %s19
        %p150 = scmp.lt.s32.totalorder %s149, 63
        %s151 = scalar_select %p150, %s149, 63
        %s152 = smul.addr %s151, 8
        %s153 = scalar_lea.vmem %s0, %s152
        %p154 = pneg %p40
        %p155 = pneg %p37
        %p156 = pneg %p61
        %p157 = pneg %p58
        %p158 = pneg %p82
        %p159 = pneg %p79
        %p160 = pneg %p108
        %p161 = pneg %p105
        %s162 = sand.u32 %s95, 1
        %s163 = scalar_lea.sflag [#allocation4], %s162
        %s164 = sand.u32 %s95, 1
        %s165 = smul.addr %s164, 32
        %s166 = scalar_lea.vmem [#allocation3], %s165
        %s167 = smul.u32 32, %s19
        %p168 = scmp.lt.s32.totalorder %s167, 63
        %s169 = scalar_select %p168, %s167, 63
        %s170 = smul.addr %s169, 8
        %s171 = scalar_lea.vmem %s0, %s170
        %s172 = smul.u32 32, %s19
        %s173 = smul.u32 32, %s19
        %v174 = vld [vmem:[%s1] sm:$0xff]
        %v175 = vld [vmem:[%s1 + $0x8] sm:$0xff]
        %v176 = vld [vmem:[%s1 + $0x10] sm:$0xff]
        %v177 = vld [vmem:[%s1 + $0x18] sm:$0xff]
        %v178 = vld [vmem:[#allocation2] sm:$0x1]
        %v179 = vld [vmem:[%s171] sm:$0x3f]
        %v180 = vld [vmem:[%s171 + $0x8] sm:$0x3f]
        %v181 = vld [vmem:[%s171 + $0x10] sm:$0x3f]
        %v182 = vld [vmem:[%s171 + $0x18] sm:$0x3f]
        %184 = vset.pattern.permute.xlu0 6
        %185 = vperm.xlu0 %184, %v174
        %v186 = vpop.permute.xlu0 %185
        %189 = vset.pattern.permute.xlu0 6
        %190 = vperm.xlu0 %189, %v175
        %v191 = vpop.permute.xlu0 %190
        %194 = vset.pattern.permute.xlu0 6
        %195 = vperm.xlu0 %194, %v176
        %v196 = vpop.permute.xlu0 %195
        %199 = vset.pattern.permute.xlu0 6
        %200 = vperm.xlu0 %199, %v177
        %v201 = vpop.permute.xlu0 %200
        %vm203 = vcmask 48128
        %v204 = vsel %vm203, %v174, 0
        %v206 = vsel %vm203, %v175, 0
        %v208 = vsel %vm203, %v176, 0
        %v210 = vsel %vm203, %v177, 0
        %vm212 = vcmask 1045504
        %v214 = vsel %vm212, %v179, 0
        %v217 = vsel %vm212, %v180, 0
        %v220 = vsel %vm212, %v181, 0
        %v223 = vsel %vm212, %v182, 0
        %225 = vmatprep.subr.mxu0 %v217
        %226 = vmatpush1.msra.mxu0 %v214
        %227 = vmatprep.subr.mxu0 0.0
        %228 = vmatpush1.msra.mxu0 0.0
        %229 = vmatprep.subr.mxu0 0.0
        %230 = vmatpush1.msra.mxu0 0.0
        %231 = vmatprep.subr.mxu0 0.0
        %232 = vmatpush1.msra.mxu0 0.0
        %233 = vmatprep.subr.mxu0 0.0
        %234 = vmatpush1.msra.mxu0 0.0
        %235 = vmatprep.subr.mxu0 0.0
        %236 = vmatpush1.msra.mxu0 0.0
        %237 = vmatprep.subr.mxu0 0.0
        %238 = vmatpush1.msra.mxu0 0.0
        %239 = vmatprep.subr.mxu0 0.0
        %240 = vmatpush1.msra.mxu0 0.0
        %241 = vmatprep.subr.mxu0 0.0
        %242 = vmatpush1.msra.mxu0 0.0
        %243 = vmatprep.subr.mxu0 0.0
        %244 = vmatpush1.msra.mxu0 0.0
        %245 = vmatprep.subr.mxu0 0.0
        %246 = vmatpush1.msra.mxu0 0.0
        %247 = vmatprep.subr.mxu0 0.0
        %248 = vmatpush1.msra.mxu0 0.0
        %249 = vmatprep.subr.mxu0 0.0
        %250 = vmatpush1.msra.mxu0 0.0
        %251 = vmatprep.subr.mxu0 0.0
        %252 = vmatpush1.msra.mxu0 0.0
        %253 = vmatprep.subr.mxu0 0.0
        %254 = vmatpush1.msra.mxu0 0.0
        %255 = vmatprep.subr.mxu0 0.0
        %256 = vmatpush1.msra.mxu0 0.0
        %257 = vmatprep.subr.mxu0 0.0
        %258 = vmatpush1.msra.mxu0 0.0
        %259 = vmatprep.subr.mxu0 0.0
        %260 = vmatpush1.msra.mxu0 0.0
        %261 = vmatprep.subr.mxu0 0.0
        %262 = vmatpush1.msra.mxu0 0.0
        %263 = vmatprep.subr.mxu0 0.0
        %264 = vmatpush1.msra.mxu0 0.0
        %265 = vmatprep.subr.mxu0 0.0
        %266 = vmatpush1.msra.mxu0 0.0
        %267 = vmatprep.subr.mxu0 0.0
        %268 = vmatpush1.msra.mxu0 0.0
        %269 = vmatprep.subr.mxu0 0.0
        %270 = vmatpush1.msra.mxu0 0.0
        %271 = vmatprep.subr.mxu0 0.0
        %272 = vmatpush1.msra.mxu0 0.0
        %273 = vmatprep.subr.mxu0 0.0
        %274 = vmatpush1.msra.mxu0 0.0
        %275 = vmatprep.subr.mxu0 0.0
        %276 = vmatpush1.msra.mxu0 0.0
        %277 = vmatprep.subr.mxu0 0.0
        %278 = vmatpush1.msra.mxu0 0.0
        %279 = vmatprep.subr.mxu0 0.0
        %280 = vmatpush1.msra.mxu0 0.0
        %281 = vmatprep.subr.mxu0 0.0
        %282 = vmatpush1.msra.mxu0 0.0
        %283 = vmatprep.subr.mxu0 0.0
        %284 = vmatpush1.msra.mxu0 0.0
        %285 = vmatprep.subr.mxu0 0.0
        %286 = vmatpush1.msra.mxu0 0.0
        %287 = vmatprep.subr.mxu0 0.0
        %288 = vmatpush1.msra.mxu0 0.0
        %289 = vmatprep.mubr.f32.mxu0 0.0
        %290 = vmatmul.mubr.f32.gmra.mrb[0].mxu0 %v204
        %v291 = vpop.f32.mrb[0].mxu0
        %v292 = vadd.f32 %v186, %v291
        %v293 = vpop.f32.mrb[0].mxu0
        %v294 = vadd.f32 %v186, %v293
        %295 = vmatprep.mubr.f32.mxu0 0.0
        %296 = vmatmul.mubr.f32.gmra.mrb[0].mxu0 %v206
        %v297 = vpop.f32.mrb[0].mxu0
        %v298 = vadd.f32 %v191, %v297
        %v299 = vpop.f32.mrb[0].mxu0
        %v300 = vadd.f32 %v191, %v299
        %301 = vmatprep.mubr.f32.mxu0 0.0
        %302 = vmatmul.mubr.f32.gmra.mrb[0].mxu0 %v208
        %v303 = vpop.f32.mrb[0].mxu0
        %v304 = vadd.f32 %v196, %v303
        %v305 = vpop.f32.mrb[0].mxu0
        %v306 = vadd.f32 %v196, %v305
        %307 = vmatprep.mubr.f32.mxu0 0.0
        %308 = vmatmul.mubr.f32.gmra.mrb[0].mxu0 %v210
        %v309 = vpop.f32.mrb[0].mxu0
        %v310 = vadd.f32 %v201, %v309
        %v311 = vpop.f32.mrb[0].mxu0
        %v312 = vadd.f32 %v201, %v311
        %313 = vdwg.mxu0
        %314 = vmatprep.subr.mxu0 %v223
        %315 = vmatpush1.msra.mxu0 %v220
        %316 = vmatprep.subr.mxu0 0.0
        %317 = vmatpush1.msra.mxu0 0.0
        %318 = vmatprep.subr.mxu0 0.0
        %319 = vmatpush1.msra.mxu0 0.0
        %320 = vmatprep.subr.mxu0 0.0
        %321 = vmatpush1.msra.mxu0 0.0
        %322 = vmatprep.subr.mxu0 0.0
        %323 = vmatpush1.msra.mxu0 0.0
        %324 = vmatprep.subr.mxu0 0.0
        %325 = vmatpush1.msra.mxu0 0.0
        %326 = vmatprep.subr.mxu0 0.0
        %327 = vmatpush1.msra.mxu0 0.0
        %328 = vmatprep.subr.mxu0 0.0
        %329 = vmatpush1.msra.mxu0 0.0
        %330 = vmatprep.subr.mxu0 0.0
        %331 = vmatpush1.msra.mxu0 0.0
        %332 = vmatprep.subr.mxu0 0.0
        %333 = vmatpush1.msra.mxu0 0.0
        %334 = vmatprep.subr.mxu0 0.0
        %335 = vmatpush1.msra.mxu0 0.0
        %336 = vmatprep.subr.mxu0 0.0
        %337 = vmatpush1.msra.mxu0 0.0
        %338 = vmatprep.subr.mxu0 0.0
        %339 = vmatpush1.msra.mxu0 0.0
        %340 = vmatprep.subr.mxu0 0.0
        %341 = vmatpush1.msra.mxu0 0.0
        %342 = vmatprep.subr.mxu0 0.0
        %343 = vmatpush1.msra.mxu0 0.0
        %344 = vmatprep.subr.mxu0 0.0
        %345 = vmatpush1.msra.mxu0 0.0
        %346 = vmatprep.subr.mxu0 0.0
        %347 = vmatpush1.msra.mxu0 0.0
        %348 = vmatprep.subr.mxu0 0.0
        %349 = vmatpush1.msra.mxu0 0.0
        %350 = vmatprep.subr.mxu0 0.0
        %351 = vmatpush1.msra.mxu0 0.0
        %352 = vmatprep.subr.mxu0 0.0
        %353 = vmatpush1.msra.mxu0 0.0
        %354 = vmatprep.subr.mxu0 0.0
        %355 = vmatpush1.msra.mxu0 0.0
        %356 = vmatprep.subr.mxu0 0.0
        %357 = vmatpush1.msra.mxu0 0.0
        %358 = vmatprep.subr.mxu0 0.0
        %359 = vmatpush1.msra.mxu0 0.0
        %360 = vmatprep.subr.mxu0 0.0
        %361 = vmatpush1.msra.mxu0 0.0
        %362 = vmatprep.subr.mxu0 0.0
        %363 = vmatpush1.msra.mxu0 0.0
        %364 = vmatprep.subr.mxu0 0.0
        %365 = vmatpush1.msra.mxu0 0.0
        %366 = vmatprep.subr.mxu0 0.0
        %367 = vmatpush1.msra.mxu0 0.0
        %368 = vmatprep.subr.mxu0 0.0
        %369 = vmatpush1.msra.mxu0 0.0
        %370 = vmatprep.subr.mxu0 0.0
        %371 = vmatpush1.msra.mxu0 0.0
        %372 = vmatprep.subr.mxu0 0.0
        %373 = vmatpush1.msra.mxu0 0.0
        %374 = vmatprep.subr.mxu0 0.0
        %375 = vmatpush1.msra.mxu0 0.0
        %376 = vmatprep.subr.mxu0 0.0
        %377 = vmatpush1.msra.mxu0 0.0
        %378 = vmatprep.mubr.f32.mxu0 0.0
        %379 = vmatmul.mubr.f32.gmra.mrb[0].mxu0 %v204
        %v380 = vpop.f32.mrb[0].mxu0
        %v381 = vadd.f32 %v186, %v380
        %v382 = vpop.f32.mrb[0].mxu0
        %v383 = vadd.f32 %v186, %v382
        %384 = vmatprep.mubr.f32.mxu0 0.0
        %385 = vmatmul.mubr.f32.gmra.mrb[0].mxu0 %v206
        %v386 = vpop.f32.mrb[0].mxu0
        %v387 = vadd.f32 %v191, %v386
        %v388 = vpop.f32.mrb[0].mxu0
        %v389 = vadd.f32 %v191, %v388
        %390 = vmatprep.mubr.f32.mxu0 0.0
        %391 = vmatmul.mubr.f32.gmra.mrb[0].mxu0 %v208
        %v392 = vpop.f32.mrb[0].mxu0
        %v393 = vadd.f32 %v196, %v392
        %v394 = vpop.f32.mrb[0].mxu0
        %v395 = vadd.f32 %v196, %v394
        %396 = vmatprep.mubr.f32.mxu0 0.0
        %397 = vmatmul.mubr.f32.gmra.mrb[0].mxu0 %v210
        %v398 = vpop.f32.mrb[0].mxu0
        %v399 = vadd.f32 %v201, %v398
        %v400 = vpop.f32.mrb[0].mxu0
        %v401 = vadd.f32 %v201, %v400
        %402 = vdwg.mxu0
        %v403 = vmax.f32 %v292, 0.0
        %v404 = vmax.f32 %v294, 0.0
        %v405 = vmax.f32 %v381, 0.0
        %v406 = vmax.f32 %v383, 0.0
        %v407 = vmax.f32 %v298, 0.0
        %v408 = vmax.f32 %v300, 0.0
        %v409 = vmax.f32 %v387, 0.0
        %v410 = vmax.f32 %v389, 0.0
        %v411 = vmax.f32 %v304, 0.0
        %v412 = vmax.f32 %v306, 0.0
        %v413 = vmax.f32 %v393, 0.0
        %v414 = vmax.f32 %v395, 0.0
        %v415 = vmax.f32 %v310, 0.0
        %v416 = vmax.f32 %v312, 0.0
        %v417 = vmax.f32 %v399, 0.0
        %v418 = vmax.f32 %v401, 0.0
        %419 = vset.pattern.permute.xlu0 7
        %420 = vperm.xlu0 %419, %v174
        %v421 = vpop.permute.xlu0 %420
        %423 = vset.pattern.permute.xlu0 7
        %424 = vperm.xlu0 %423, %v175
        %v425 = vpop.permute.xlu0 %424
        %427 = vset.pattern.permute.xlu0 7
        %428 = vperm.xlu0 %427, %v176
        %v429 = vpop.permute.xlu0 %428
        %431 = vset.pattern.permute.xlu0 7
        %432 = vperm.xlu0 %431, %v177
        %v433 = vpop.permute.xlu0 %432
        %v435 = vmul.f32 %v403, %v421
        %v436 = vmul.f32 %v404, %v421
        %v437 = vmul.f32 %v405, %v421
        %v438 = vmul.f32 %v406, %v421
        %v439 = vmul.f32 %v407, %v425
        %v440 = vmul.f32 %v408, %v425
        %v441 = vmul.f32 %v409, %v425
        %v442 = vmul.f32 %v410, %v425
        %v443 = vmul.f32 %v411, %v429
        %v444 = vmul.f32 %v412, %v429
        %v445 = vmul.f32 %v413, %v429
        %v446 = vmul.f32 %v414, %v429
        %v447 = vmul.f32 %v415, %v433
        %v448 = vmul.f32 %v416, %v433
        %v449 = vmul.f32 %v417, %v433
        %v450 = vmul.f32 %v418, %v433
        %v451 = vadd.f32 %v435, %v439
        %v452 = vadd.f32 %v451, %v443
        %v453 = vadd.f32 %v452, %v447
        %v454 = vrot.slane %v453, 4
        %v455 = vadd.f32 %v453, %v454
        %v456 = vrot.slane %v455, 2
        %v457 = vadd.f32 %v455, %v456
        %v458 = vrot.slane %v457, 1
        %v459 = vadd.f32 %v457, %v458
        %v460 = vadd.f32 %v436, %v440
        %v461 = vadd.f32 %v460, %v444
        %v462 = vadd.f32 %v461, %v448
        %v463 = vrot.slane %v462, 4
        %v464 = vadd.f32 %v462, %v463
        %v465 = vrot.slane %v464, 2
        %v466 = vadd.f32 %v464, %v465
        %v467 = vrot.slane %v466, 1
        %v468 = vadd.f32 %v466, %v467
        %v469 = vadd.f32 %v437, %v441
        %v470 = vadd.f32 %v469, %v445
        %v471 = vadd.f32 %v470, %v449
        %v472 = vrot.slane %v471, 4
        %v473 = vadd.f32 %v471, %v472
        %v474 = vrot.slane %v473, 2
        %v475 = vadd.f32 %v473, %v474
        %v476 = vrot.slane %v475, 1
        %v477 = vadd.f32 %v475, %v476
        %v478 = vadd.f32 %v438, %v442
        %v479 = vadd.f32 %v478, %v446
        %v480 = vadd.f32 %v479, %v450
        %v481 = vrot.slane %v480, 4
        %v482 = vadd.f32 %v480, %v481
        %v483 = vrot.slane %v482, 2
        %v484 = vadd.f32 %v482, %v483
        %v485 = vrot.slane %v484, 1
        %v486 = vadd.f32 %v484, %v485
        %488 = vset.pattern.permute.xlu0 0
        %489 = vperm.xlu0 %488, %v178
        %v490 = vpop.permute.xlu0 %489
        %v492 = vlaneseq
        %v493 = vshrl.u32 %v492, 7
        %v494 = vsub.s32 0, %v493
        %v495 = vrot.slane %v490, %v494
        %v496 = vadd.f32 %v459, %v495
        %v497 = vadd.f32 %v468, %v495
        %v498 = vadd.f32 %v477, %v495
        %v499 = vadd.f32 %v486, %v495
        %v500 = vxor.u32 %v496, 2147483648
        %v501 = vxor.u32 %v497, 2147483648
        %v502 = vxor.u32 %v498, 2147483648
        %v503 = vxor.u32 %v499, 2147483648
        %v504 = vmul.f32 %v500, 1.442695
        %v505 = vpow.pop %v504
        %v506 = vmul.f32 %v501, 1.442695
        %v507 = vpow.pop %v506
        %v508 = vmul.f32 %v502, 1.442695
        %v509 = vpow.pop %v508
        %v510 = vmul.f32 %v503, 1.442695
        %v511 = vpow.pop %v510
        %v512 = vadd.f32 %v505, 1.0
        %v513 = vadd.f32 %v507, 1.0
        %v514 = vadd.f32 %v509, 1.0
        %v515 = vadd.f32 %v511, 1.0
        %v516 = vrcp.pop %v512
        %v517 = vmul.f32 1.0, %v516
        %v518 = vrcp.pop %v513
        %v519 = vmul.f32 1.0, %v518
        %v520 = vrcp.pop %v514
        %v521 = vmul.f32 1.0, %v520
        %v522 = vrcp.pop %v515
        %v523 = vmul.f32 1.0, %v522
        %v528 = vcombine.low %v517, %v519
        %v529 = vcombine.low %v521, %v523
        %v531 = vunpack.c.l.s4 1966171168
        %v532 = vunpack.c.0.s8 %v531
        %v533 = vlaneseq
        %v534 = vshrl.u32 %v533, 7
        %v535 = vsub.s32 %v532, %v534
        %v536 = vrot.slane %v528, %v535
        %v538 = vunpack.c.l.s4 1966171168
        %v539 = vunpack.c.0.s8 %v538
        %v540 = vlaneseq
        %v541 = vshrl.u32 %v540, 7
        %v542 = vsub.s32 %v539, %v541
        %v543 = vrot.slane %v529, %v542
        %v544 = vcombine.low %v536, %v543
        %v546 = vunpack.c.l.s4 1966171168
        %v547 = vunpack.c.0.s8 %v546
        %v548 = vlaneseq
        %v549 = vshrl.u32 %v548, 7
        %v550 = vsub.s32 %v547, %v549
        %v551 = vrot.slane %v544, %v550
        %v553 = vlaneseq
        %vm554 = vcmp.ge.s32.totalorder %v553, 0
        %vm555 = vcmp.lt.s32.totalorder %v553, 512
        %vm556 = vmand %vm554, %vm555
        %557 = vst.msk [vmem:[%s166] sm:$0xf] %vm556, %v551
        %s558 = scalar_lea.vmem %s171, 32
        %v559 = vld [vmem:[%s558] sm:$0x3f]
        %v560 = vld [vmem:[%s558 + $0x8] sm:$0x3f]
        %v561 = vld [vmem:[%s558 + $0x10] sm:$0x3f]
        %v562 = vld [vmem:[%s558 + $0x18] sm:$0x3f]
        %v564 = vsel %vm212, %v559, 0
        %v567 = vsel %vm212, %v560, 0
        %v570 = vsel %vm212, %v561, 0
        %v573 = vsel %vm212, %v562, 0
        %575 = vmatprep.subr.mxu0 %v567
        %576 = vmatpush1.msra.mxu0 %v564
        %577 = vmatprep.subr.mxu0 0.0
        %578 = vmatpush1.msra.mxu0 0.0
        %579 = vmatprep.subr.mxu0 0.0
        %580 = vmatpush1.msra.mxu0 0.0
        %581 = vmatprep.subr.mxu0 0.0
        %582 = vmatpush1.msra.mxu0 0.0
        %583 = vmatprep.subr.mxu0 0.0
        %584 = vmatpush1.msra.mxu0 0.0
        %585 = vmatprep.subr.mxu0 0.0
        %586 = vmatpush1.msra.mxu0 0.0
        %587 = vmatprep.subr.mxu0 0.0
        %588 = vmatpush1.msra.mxu0 0.0
        %589 = vmatprep.subr.mxu0 0.0
        %590 = vmatpush1.msra.mxu0 0.0
        %591 = vmatprep.subr.mxu0 0.0
        %592 = vmatpush1.msra.mxu0 0.0
        %593 = vmatprep.subr.mxu0 0.0
        %594 = vmatpush1.msra.mxu0 0.0
        %595 = vmatprep.subr.mxu0 0.0
        %596 = vmatpush1.msra.mxu0 0.0
        %597 = vmatprep.subr.mxu0 0.0
        %598 = vmatpush1.msra.mxu0 0.0
        %599 = vmatprep.subr.mxu0 0.0
        %600 = vmatpush1.msra.mxu0 0.0
        %601 = vmatprep.subr.mxu0 0.0
        %602 = vmatpush1.msra.mxu0 0.0
        %603 = vmatprep.subr.mxu0 0.0
        %604 = vmatpush1.msra.mxu0 0.0
        %605 = vmatprep.subr.mxu0 0.0
        %606 = vmatpush1.msra.mxu0 0.0
        %607 = vmatprep.subr.mxu0 0.0
        %608 = vmatpush1.msra.mxu0 0.0
        %609 = vmatprep.subr.mxu0 0.0
        %610 = vmatpush1.msra.mxu0 0.0
        %611 = vmatprep.subr.mxu0 0.0
        %612 = vmatpush1.msra.mxu0 0.0
        %613 = vmatprep.subr.mxu0 0.0
        %614 = vmatpush1.msra.mxu0 0.0
        %615 = vmatprep.subr.mxu0 0.0
        %616 = vmatpush1.msra.mxu0 0.0
        %617 = vmatprep.subr.mxu0 0.0
        %618 = vmatpush1.msra.mxu0 0.0
        %619 = vmatprep.subr.mxu0 0.0
        %620 = vmatpush1.msra.mxu0 0.0
        %621 = vmatprep.subr.mxu0 0.0
        %622 = vmatpush1.msra.mxu0 0.0
        %623 = vmatprep.subr.mxu0 0.0
        %624 = vmatpush1.msra.mxu0 0.0
        %625 = vmatprep.subr.mxu0 0.0
        %626 = vmatpush1.msra.mxu0 0.0
        %627 = vmatprep.subr.mxu0 0.0
        %628 = vmatpush1.msra.mxu0 0.0
        %629 = vmatprep.subr.mxu0 0.0
        %630 = vmatpush1.msra.mxu0 0.0
        %631 = vmatprep.subr.mxu0 0.0
        %632 = vmatpush1.msra.mxu0 0.0
        %633 = vmatprep.subr.mxu0 0.0
        %634 = vmatpush1.msra.mxu0 0.0
        %635 = vmatprep.subr.mxu0 0.0
        %636 = vmatpush1.msra.mxu0 0.0
        %637 = vmatprep.subr.mxu0 0.0
        %638 = vmatpush1.msra.mxu0 0.0
        %639 = vmatprep.mubr.f32.mxu0 0.0
        %640 = vmatmul.mubr.f32.gmra.mrb[0].mxu0 %v204
        %v641 = vpop.f32.mrb[0].mxu0
        %v642 = vadd.f32 %v186, %v641
        %v643 = vpop.f32.mrb[0].mxu0
        %v644 = vadd.f32 %v186, %v643
        %645 = vmatprep.mubr.f32.mxu0 0.0
        %646 = vmatmul.mubr.f32.gmra.mrb[0].mxu0 %v206
        %v647 = vpop.f32.mrb[0].mxu0
        %v648 = vadd.f32 %v191, %v647
        %v649 = vpop.f32.mrb[0].mxu0
        %v650 = vadd.f32 %v191, %v649
        %651 = vmatprep.mubr.f32.mxu0 0.0
        %652 = vmatmul.mubr.f32.gmra.mrb[0].mxu0 %v208
        %v653 = vpop.f32.mrb[0].mxu0
        %v654 = vadd.f32 %v196, %v653
        %v655 = vpop.f32.mrb[0].mxu0
        %v656 = vadd.f32 %v196, %v655
        %657 = vmatprep.mubr.f32.mxu0 0.0
        %658 = vmatmul.mubr.f32.gmra.mrb[0].mxu0 %v210
        %v659 = vpop.f32.mrb[0].mxu0
        %v660 = vadd.f32 %v201, %v659
        %v661 = vpop.f32.mrb[0].mxu0
        %v662 = vadd.f32 %v201, %v661
        %663 = vdwg.mxu0
        %664 = vmatprep.subr.mxu0 %v573
        %665 = vmatpush1.msra.mxu0 %v570
        %666 = vmatprep.subr.mxu0 0.0
        %667 = vmatpush1.msra.mxu0 0.0
        %668 = vmatprep.subr.mxu0 0.0
        %669 = vmatpush1.msra.mxu0 0.0
        %670 = vmatprep.subr.mxu0 0.0
        %671 = vmatpush1.msra.mxu0 0.0
        %672 = vmatprep.subr.mxu0 0.0
        %673 = vmatpush1.msra.mxu0 0.0
        %674 = vmatprep.subr.mxu0 0.0
        %675 = vmatpush1.msra.mxu0 0.0
        %676 = vmatprep.subr.mxu0 0.0
        %677 = vmatpush1.msra.mxu0 0.0
        %678 = vmatprep.subr.mxu0 0.0
        %679 = vmatpush1.msra.mxu0 0.0
        %680 = vmatprep.subr.mxu0 0.0
        %681 = vmatpush1.msra.mxu0 0.0
        %682 = vmatprep.subr.mxu0 0.0
        %683 = vmatpush1.msra.mxu0 0.0
        %684 = vmatprep.subr.mxu0 0.0
        %685 = vmatpush1.msra.mxu0 0.0
        %686 = vmatprep.subr.mxu0 0.0
        %687 = vmatpush1.msra.mxu0 0.0
        %688 = vmatprep.subr.mxu0 0.0
        %689 = vmatpush1.msra.mxu0 0.0
        %690 = vmatprep.subr.mxu0 0.0
        %691 = vmatpush1.msra.mxu0 0.0
        %692 = vmatprep.subr.mxu0 0.0
        %693 = vmatpush1.msra.mxu0 0.0
        %694 = vmatprep.subr.mxu0 0.0
        %695 = vmatpush1.msra.mxu0 0.0
        %696 = vmatprep.subr.mxu0 0.0
        %697 = vmatpush1.msra.mxu0 0.0
        %698 = vmatprep.subr.mxu0 0.0
        %699 = vmatpush1.msra.mxu0 0.0
        %700 = vmatprep.subr.mxu0 0.0
        %701 = vmatpush1.msra.mxu0 0.0
        %702 = vmatprep.subr.mxu0 0.0
        %703 = vmatpush1.msra.mxu0 0.0
        %704 = vmatprep.subr.mxu0 0.0
        %705 = vmatpush1.msra.mxu0 0.0
        %706 = vmatprep.subr.mxu0 0.0
        %707 = vmatpush1.msra.mxu0 0.0
        %708 = vmatprep.subr.mxu0 0.0
        %709 = vmatpush1.msra.mxu0 0.0
        %710 = vmatprep.subr.mxu0 0.0
        %711 = vmatpush1.msra.mxu0 0.0
        %712 = vmatprep.subr.mxu0 0.0
        %713 = vmatpush1.msra.mxu0 0.0
        %714 = vmatprep.subr.mxu0 0.0
        %715 = vmatpush1.msra.mxu0 0.0
        %716 = vmatprep.subr.mxu0 0.0
        %717 = vmatpush1.msra.mxu0 0.0
        %718 = vmatprep.subr.mxu0 0.0
        %719 = vmatpush1.msra.mxu0 0.0
        %720 = vmatprep.subr.mxu0 0.0
        %721 = vmatpush1.msra.mxu0 0.0
        %722 = vmatprep.subr.mxu0 0.0
        %723 = vmatpush1.msra.mxu0 0.0
        %724 = vmatprep.subr.mxu0 0.0
        %725 = vmatpush1.msra.mxu0 0.0
        %726 = vmatprep.subr.mxu0 0.0
        %727 = vmatpush1.msra.mxu0 0.0
        %728 = vmatprep.mubr.f32.mxu0 0.0
        %729 = vmatmul.mubr.f32.gmra.mrb[0].mxu0 %v204
        %v730 = vpop.f32.mrb[0].mxu0
        %v731 = vadd.f32 %v186, %v730
        %v732 = vpop.f32.mrb[0].mxu0
        %v733 = vadd.f32 %v186, %v732
        %734 = vmatprep.mubr.f32.mxu0 0.0
        %735 = vmatmul.mubr.f32.gmra.mrb[0].mxu0 %v206
        %v736 = vpop.f32.mrb[0].mxu0
        %v737 = vadd.f32 %v191, %v736
        %v738 = vpop.f32.mrb[0].mxu0
        %v739 = vadd.f32 %v191, %v738
        %740 = vmatprep.mubr.f32.mxu0 0.0
        %741 = vmatmul.mubr.f32.gmra.mrb[0].mxu0 %v208
        %v742 = vpop.f32.mrb[0].mxu0
        %v743 = vadd.f32 %v196, %v742
        %v744 = vpop.f32.mrb[0].mxu0
        %v745 = vadd.f32 %v196, %v744
        %746 = vmatprep.mubr.f32.mxu0 0.0
        %747 = vmatmul.mubr.f32.gmra.mrb[0].mxu0 %v210
        %v748 = vpop.f32.mrb[0].mxu0
        %v749 = vadd.f32 %v201, %v748
        %v750 = vpop.f32.mrb[0].mxu0
        %v751 = vadd.f32 %v201, %v750
        %752 = vdwg.mxu0
        %v753 = vmax.f32 %v642, 0.0
        %v754 = vmax.f32 %v644, 0.0
        %v755 = vmax.f32 %v731, 0.0
        %v756 = vmax.f32 %v733, 0.0
        %v757 = vmax.f32 %v648, 0.0
        %v758 = vmax.f32 %v650, 0.0
        %v759 = vmax.f32 %v737, 0.0
        %v760 = vmax.f32 %v739, 0.0
        %v761 = vmax.f32 %v654, 0.0
        %v762 = vmax.f32 %v656, 0.0
        %v763 = vmax.f32 %v743, 0.0
        %v764 = vmax.f32 %v745, 0.0
        %v765 = vmax.f32 %v660, 0.0
        %v766 = vmax.f32 %v662, 0.0
        %v767 = vmax.f32 %v749, 0.0
        %v768 = vmax.f32 %v751, 0.0
        %v769 = vmul.f32 %v753, %v421
        %v770 = vmul.f32 %v754, %v421
        %v771 = vmul.f32 %v755, %v421
        %v772 = vmul.f32 %v756, %v421
        %v773 = vmul.f32 %v757, %v425
        %v774 = vmul.f32 %v758, %v425
        %v775 = vmul.f32 %v759, %v425
        %v776 = vmul.f32 %v760, %v425
        %v777 = vmul.f32 %v761, %v429
        %v778 = vmul.f32 %v762, %v429
        %v779 = vmul.f32 %v763, %v429
        %v780 = vmul.f32 %v764, %v429
        %v781 = vmul.f32 %v765, %v433
        %v782 = vmul.f32 %v766, %v433
        %v783 = vmul.f32 %v767, %v433
        %v784 = vmul.f32 %v768, %v433
        %v785 = vadd.f32 %v769, %v773
        %v786 = vadd.f32 %v785, %v777
        %v787 = vadd.f32 %v786, %v781
        %v788 = vrot.slane %v787, 4
        %v789 = vadd.f32 %v787, %v788
        %v790 = vrot.slane %v789, 2
        %v791 = vadd.f32 %v789, %v790
        %v792 = vrot.slane %v791, 1
        %v793 = vadd.f32 %v791, %v792
        %v794 = vadd.f32 %v770, %v774
        %v795 = vadd.f32 %v794, %v778
        %v796 = vadd.f32 %v795, %v782
        %v797 = vrot.slane %v796, 4
        %v798 = vadd.f32 %v796, %v797
        %v799 = vrot.slane %v798, 2
        %v800 = vadd.f32 %v798, %v799
        %v801 = vrot.slane %v800, 1
        %v802 = vadd.f32 %v800, %v801
        %v803 = vadd.f32 %v771, %v775
        %v804 = vadd.f32 %v803, %v779
        %v805 = vadd.f32 %v804, %v783
        %v806 = vrot.slane %v805, 4
        %v807 = vadd.f32 %v805, %v806
        %v808 = vrot.slane %v807, 2
        %v809 = vadd.f32 %v807, %v808
        %v810 = vrot.slane %v809, 1
        %v811 = vadd.f32 %v809, %v810
        %v812 = vadd.f32 %v772, %v776
        %v813 = vadd.f32 %v812, %v780
        %v814 = vadd.f32 %v813, %v784
        %v815 = vrot.slane %v814, 4
        %v816 = vadd.f32 %v814, %v815
        %v817 = vrot.slane %v816, 2
        %v818 = vadd.f32 %v816, %v817
        %v819 = vrot.slane %v818, 1
        %v820 = vadd.f32 %v818, %v819
        %v821 = vadd.f32 %v793, %v495
        %v822 = vadd.f32 %v802, %v495
        %v823 = vadd.f32 %v811, %v495
        %v824 = vadd.f32 %v820, %v495
        %v825 = vxor.u32 %v821, 2147483648
        %v826 = vxor.u32 %v822, 2147483648
        %v827 = vxor.u32 %v823, 2147483648
        %v828 = vxor.u32 %v824, 2147483648
        %v829 = vmul.f32 %v825, 1.442695
        %v830 = vpow.pop %v829
        %v831 = vmul.f32 %v826, 1.442695
        %v832 = vpow.pop %v831
        %v833 = vmul.f32 %v827, 1.442695
        %v834 = vpow.pop %v833
        %v835 = vmul.f32 %v828, 1.442695
        %v836 = vpow.pop %v835
        %v837 = vadd.f32 %v830, 1.0
        %v838 = vadd.f32 %v832, 1.0
        %v839 = vadd.f32 %v834, 1.0
        %v840 = vadd.f32 %v836, 1.0
        %v841 = vrcp.pop %v837
        %v842 = vmul.f32 1.0, %v841
        %v843 = vrcp.pop %v838
        %v844 = vmul.f32 1.0, %v843
        %v845 = vrcp.pop %v839
        %v846 = vmul.f32 1.0, %v845
        %v847 = vrcp.pop %v840
        %v848 = vmul.f32 1.0, %v847
        %v853 = vcombine.low %v842, %v844
        %v854 = vcombine.low %v846, %v848
        %v856 = vunpack.c.l.s4 1966171168
        %v857 = vunpack.c.0.s8 %v856
        %v858 = vlaneseq
        %v859 = vshrl.u32 %v858, 7
        %v860 = vsub.s32 %v857, %v859
        %v861 = vrot.slane %v853, %v860
        %v863 = vunpack.c.l.s4 1966171168
        %v864 = vunpack.c.0.s8 %v863
        %v865 = vlaneseq
        %v866 = vshrl.u32 %v865, 7
        %v867 = vsub.s32 %v864, %v866
        %v868 = vrot.slane %v854, %v867
        %v869 = vcombine.low %v861, %v868
        %v871 = vunpack.c.l.s4 1966171168
        %v872 = vunpack.c.0.s8 %v871
        %v873 = vlaneseq
        %v874 = vshrl.u32 %v873, 7
        %v875 = vsub.s32 %v872, %v874
        %v876 = vrot.slane %v869, %v875
        %s878 = scalar_lea.vmem %s166, 4 [#allocation3]
        %879 = vst.msk [vmem:[%s878] sm:$0xf] %vm556, %v876
        %s880 = scalar_lea.vmem %s171, 64
        %v881 = vld [vmem:[%s880] sm:$0x3f]
        %v882 = vld [vmem:[%s880 + $0x8] sm:$0x3f]
        %v883 = vld [vmem:[%s880 + $0x10] sm:$0x3f]
        %v884 = vld [vmem:[%s880 + $0x18] sm:$0x3f]
        %v886 = vsel %vm212, %v881, 0
        %v889 = vsel %vm212, %v882, 0
        %v892 = vsel %vm212, %v883, 0
        %v895 = vsel %vm212, %v884, 0
        %897 = vmatprep.subr.mxu0 %v889
        %898 = vmatpush1.msra.mxu0 %v886
        %899 = vmatprep.subr.mxu0 0.0
        %900 = vmatpush1.msra.mxu0 0.0
        %901 = vmatprep.subr.mxu0 0.0
        %902 = vmatpush1.msra.mxu0 0.0
        %903 = vmatprep.subr.mxu0 0.0
        %904 = vmatpush1.msra.mxu0 0.0
        %905 = vmatprep.subr.mxu0 0.0
        %906 = vmatpush1.msra.mxu0 0.0
        %907 = vmatprep.subr.mxu0 0.0
        %908 = vmatpush1.msra.mxu0 0.0
        %909 = vmatprep.subr.mxu0 0.0
        %910 = vmatpush1.msra.mxu0 0.0
        %911 = vmatprep.subr.mxu0 0.0
        %912 = vmatpush1.msra.mxu0 0.0
        %913 = vmatprep.subr.mxu0 0.0
        %914 = vmatpush1.msra.mxu0 0.0
        %915 = vmatprep.subr.mxu0 0.0
        %916 = vmatpush1.msra.mxu0 0.0
        %917 = vmatprep.subr.mxu0 0.0
        %918 = vmatpush1.msra.mxu0 0.0
        %919 = vmatprep.subr.mxu0 0.0
        %920 = vmatpush1.msra.mxu0 0.0
        %921 = vmatprep.subr.mxu0 0.0
        %922 = vmatpush1.msra.mxu0 0.0
        %923 = vmatprep.subr.mxu0 0.0
        %924 = vmatpush1.msra.mxu0 0.0
        %925 = vmatprep.subr.mxu0 0.0
        %926 = vmatpush1.msra.mxu0 0.0
        %927 = vmatprep.subr.mxu0 0.0
        %928 = vmatpush1.msra.mxu0 0.0
        %929 = vmatprep.subr.mxu0 0.0
        %930 = vmatpush1.msra.mxu0 0.0
        %931 = vmatprep.subr.mxu0 0.0
        %932 = vmatpush1.msra.mxu0 0.0
        %933 = vmatprep.subr.mxu0 0.0
        %934 = vmatpush1.msra.mxu0 0.0
        %935 = vmatprep.subr.mxu0 0.0
        %936 = vmatpush1.msra.mxu0 0.0
        %937 = vmatprep.subr.mxu0 0.0
        %938 = vmatpush1.msra.mxu0 0.0
        %939 = vmatprep.subr.mxu0 0.0
        %940 = vmatpush1.msra.mxu0 0.0
        %941 = vmatprep.subr.mxu0 0.0
        %942 = vmatpush1.msra.mxu0 0.0
        %943 = vmatprep.subr.mxu0 0.0
        %944 = vmatpush1.msra.mxu0 0.0
        %945 = vmatprep.subr.mxu0 0.0
        %946 = vmatpush1.msra.mxu0 0.0
        %947 = vmatprep.subr.mxu0 0.0
        %948 = vmatpush1.msra.mxu0 0.0
        %949 = vmatprep.subr.mxu0 0.0
        %950 = vmatpush1.msra.mxu0 0.0
        %951 = vmatprep.subr.mxu0 0.0
        %952 = vmatpush1.msra.mxu0 0.0
        %953 = vmatprep.subr.mxu0 0.0
        %954 = vmatpush1.msra.mxu0 0.0
        %955 = vmatprep.subr.mxu0 0.0
        %956 = vmatpush1.msra.mxu0 0.0
        %957 = vmatprep.subr.mxu0 0.0
        %958 = vmatpush1.msra.mxu0 0.0
        %959 = vmatprep.subr.mxu0 0.0
        %960 = vmatpush1.msra.mxu0 0.0
        %961 = vmatprep.mubr.f32.mxu0 0.0
        %962 = vmatmul.mubr.f32.gmra.mrb[0].mxu0 %v204
        %v963 = vpop.f32.mrb[0].mxu0
        %v964 = vadd.f32 %v186, %v963
        %v965 = vpop.f32.mrb[0].mxu0
        %v966 = vadd.f32 %v186, %v965
        %967 = vmatprep.mubr.f32.mxu0 0.0
        %968 = vmatmul.mubr.f32.gmra.mrb[0].mxu0 %v206
        %v969 = vpop.f32.mrb[0].mxu0
        %v970 = vadd.f32 %v191, %v969
        %v971 = vpop.f32.mrb[0].mxu0
        %v972 = vadd.f32 %v191, %v971
        %973 = vmatprep.mubr.f32.mxu0 0.0
        %974 = vmatmul.mubr.f32.gmra.mrb[0].mxu0 %v208
        %v975 = vpop.f32.mrb[0].mxu0
        %v976 = vadd.f32 %v196, %v975
        %v977 = vpop.f32.mrb[0].mxu0
        %v978 = vadd.f32 %v196, %v977
        %979 = vmatprep.mubr.f32.mxu0 0.0
        %980 = vmatmul.mubr.f32.gmra.mrb[0].mxu0 %v210
        %v981 = vpop.f32.mrb[0].mxu0
        %v982 = vadd.f32 %v201, %v981
        %v983 = vpop.f32.mrb[0].mxu0
        %v984 = vadd.f32 %v201, %v983
        %985 = vdwg.mxu0
        %986 = vmatprep.subr.mxu0 %v895
        %987 = vmatpush1.msra.mxu0 %v892
        %988 = vmatprep.subr.mxu0 0.0
        %989 = vmatpush1.msra.mxu0 0.0
        %990 = vmatprep.subr.mxu0 0.0
        %991 = vmatpush1.msra.mxu0 0.0
        %992 = vmatprep.subr.mxu0 0.0
        %993 = vmatpush1.msra.mxu0 0.0
        %994 = vmatprep.subr.mxu0 0.0
        %995 = vmatpush1.msra.mxu0 0.0
        %996 = vmatprep.subr.mxu0 0.0
        %997 = vmatpush1.msra.mxu0 0.0
        %998 = vmatprep.subr.mxu0 0.0
        %999 = vmatpush1.msra.mxu0 0.0
        %1000 = vmatprep.subr.mxu0 0.0
        %1001 = vmatpush1.msra.mxu0 0.0
        %1002 = vmatprep.subr.mxu0 0.0
        %1003 = vmatpush1.msra.mxu0 0.0
        %1004 = vmatprep.subr.mxu0 0.0
        %1005 = vmatpush1.msra.mxu0 0.0
        %1006 = vmatprep.subr.mxu0 0.0
        %1007 = vmatpush1.msra.mxu0 0.0
        %1008 = vmatprep.subr.mxu0 0.0
        %1009 = vmatpush1.msra.mxu0 0.0
        %1010 = vmatprep.subr.mxu0 0.0
        %1011 = vmatpush1.msra.mxu0 0.0
        %1012 = vmatprep.subr.mxu0 0.0
        %1013 = vmatpush1.msra.mxu0 0.0
        %1014 = vmatprep.subr.mxu0 0.0
        %1015 = vmatpush1.msra.mxu0 0.0
        %1016 = vmatprep.subr.mxu0 0.0
        %1017 = vmatpush1.msra.mxu0 0.0
        %1018 = vmatprep.subr.mxu0 0.0
        %1019 = vmatpush1.msra.mxu0 0.0
        %1020 = vmatprep.subr.mxu0 0.0
        %1021 = vmatpush1.msra.mxu0 0.0
        %1022 = vmatprep.subr.mxu0 0.0
        %1023 = vmatpush1.msra.mxu0 0.0
        %1024 = vmatprep.subr.mxu0 0.0
        %1025 = vmatpush1.msra.mxu0 0.0
        %1026 = vmatprep.subr.mxu0 0.0
        %1027 = vmatpush1.msra.mxu0 0.0
        %1028 = vmatprep.subr.mxu0 0.0
        %1029 = vmatpush1.msra.mxu0 0.0
        %1030 = vmatprep.subr.mxu0 0.0
        %1031 = vmatpush1.msra.mxu0 0.0
        %1032 = vmatprep.subr.mxu0 0.0
        %1033 = vmatpush1.msra.mxu0 0.0
        %1034 = vmatprep.subr.mxu0 0.0
        %1035 = vmatpush1.msra.mxu0 0.0
        %1036 = vmatprep.subr.mxu0 0.0
        %1037 = vmatpush1.msra.mxu0 0.0
        %1038 = vmatprep.subr.mxu0 0.0
        %1039 = vmatpush1.msra.mxu0 0.0
        %1040 = vmatprep.subr.mxu0 0.0
        %1041 = vmatpush1.msra.mxu0 0.0
        %1042 = vmatprep.subr.mxu0 0.0
        %1043 = vmatpush1.msra.mxu0 0.0
        %1044 = vmatprep.subr.mxu0 0.0
        %1045 = vmatpush1.msra.mxu0 0.0
        %1046 = vmatprep.subr.mxu0 0.0
        %1047 = vmatpush1.msra.mxu0 0.0
        %1048 = vmatprep.subr.mxu0 0.0
        %1049 = vmatpush1.msra.mxu0 0.0
        %1050 = vmatprep.mubr.f32.mxu0 0.0
        %1051 = vmatmul.mubr.f32.gmra.mrb[0].mxu0 %v204
        %v1052 = vpop.f32.mrb[0].mxu0
        %v1053 = vadd.f32 %v186, %v1052
        %v1054 = vpop.f32.mrb[0].mxu0
        %v1055 = vadd.f32 %v186, %v1054
        %1056 = vmatprep.mubr.f32.mxu0 0.0
        %1057 = vmatmul.mubr.f32.gmra.mrb[0].mxu0 %v206
        %v1058 = vpop.f32.mrb[0].mxu0
        %v1059 = vadd.f32 %v191, %v1058
        %v1060 = vpop.f32.mrb[0].mxu0
        %v1061 = vadd.f32 %v191, %v1060
        %1062 = vmatprep.mubr.f32.mxu0 0.0
        %1063 = vmatmul.mubr.f32.gmra.mrb[0].mxu0 %v208
        %v1064 = vpop.f32.mrb[0].mxu0
        %v1065 = vadd.f32 %v196, %v1064
        %v1066 = vpop.f32.mrb[0].mxu0
        %v1067 = vadd.f32 %v196, %v1066
        %1068 = vmatprep.mubr.f32.mxu0 0.0
        %1069 = vmatmul.mubr.f32.gmra.mrb[0].mxu0 %v210
        %v1070 = vpop.f32.mrb[0].mxu0
        %v1071 = vadd.f32 %v201, %v1070
        %v1072 = vpop.f32.mrb[0].mxu0
        %v1073 = vadd.f32 %v201, %v1072
        %1074 = vdwg.mxu0
        %v1075 = vmax.f32 %v964, 0.0
        %v1076 = vmax.f32 %v966, 0.0
        %v1077 = vmax.f32 %v1053, 0.0
        %v1078 = vmax.f32 %v1055, 0.0
        %v1079 = vmax.f32 %v970, 0.0
        %v1080 = vmax.f32 %v972, 0.0
        %v1081 = vmax.f32 %v1059, 0.0
        %v1082 = vmax.f32 %v1061, 0.0
        %v1083 = vmax.f32 %v976, 0.0
        %v1084 = vmax.f32 %v978, 0.0
        %v1085 = vmax.f32 %v1065, 0.0
        %v1086 = vmax.f32 %v1067, 0.0
        %v1087 = vmax.f32 %v982, 0.0
        %v1088 = vmax.f32 %v984, 0.0
        %v1089 = vmax.f32 %v1071, 0.0
        %v1090 = vmax.f32 %v1073, 0.0
        %v1091 = vmul.f32 %v1075, %v421
        %v1092 = vmul.f32 %v1076, %v421
        %v1093 = vmul.f32 %v1077, %v421
        %v1094 = vmul.f32 %v1078, %v421
        %v1095 = vmul.f32 %v1079, %v425
        %v1096 = vmul.f32 %v1080, %v425
        %v1097 = vmul.f32 %v1081, %v425
        %v1098 = vmul.f32 %v1082, %v425
        %v1099 = vmul.f32 %v1083, %v429
        %v1100 = vmul.f32 %v1084, %v429
        %v1101 = vmul.f32 %v1085, %v429
        %v1102 = vmul.f32 %v1086, %v429
        %v1103 = vmul.f32 %v1087, %v433
        %v1104 = vmul.f32 %v1088, %v433
        %v1105 = vmul.f32 %v1089, %v433
        %v1106 = vmul.f32 %v1090, %v433
        %v1107 = vadd.f32 %v1091, %v1095
        %v1108 = vadd.f32 %v1107, %v1099
        %v1109 = vadd.f32 %v1108, %v1103
        %v1110 = vrot.slane %v1109, 4
        %v1111 = vadd.f32 %v1109, %v1110
        %v1112 = vrot.slane %v1111, 2
        %v1113 = vadd.f32 %v1111, %v1112
        %v1114 = vrot.slane %v1113, 1
        %v1115 = vadd.f32 %v1113, %v1114
        %v1116 = vadd.f32 %v1092, %v1096
        %v1117 = vadd.f32 %v1116, %v1100
        %v1118 = vadd.f32 %v1117, %v1104
        %v1119 = vrot.slane %v1118, 4
        %v1120 = vadd.f32 %v1118, %v1119
        %v1121 = vrot.slane %v1120, 2
        %v1122 = vadd.f32 %v1120, %v1121
        %v1123 = vrot.slane %v1122, 1
        %v1124 = vadd.f32 %v1122, %v1123
        %v1125 = vadd.f32 %v1093, %v1097
        %v1126 = vadd.f32 %v1125, %v1101
        %v1127 = vadd.f32 %v1126, %v1105
        %v1128 = vrot.slane %v1127, 4
        %v1129 = vadd.f32 %v1127, %v1128
        %v1130 = vrot.slane %v1129, 2
        %v1131 = vadd.f32 %v1129, %v1130
        %v1132 = vrot.slane %v1131, 1
        %v1133 = vadd.f32 %v1131, %v1132
        %v1134 = vadd.f32 %v1094, %v1098
        %v1135 = vadd.f32 %v1134, %v1102
        %v1136 = vadd.f32 %v1135, %v1106
        %v1137 = vrot.slane %v1136, 4
        %v1138 = vadd.f32 %v1136, %v1137
        %v1139 = vrot.slane %v1138, 2
        %v1140 = vadd.f32 %v1138, %v1139
        %v1141 = vrot.slane %v1140, 1
        %v1142 = vadd.f32 %v1140, %v1141
        %v1143 = vadd.f32 %v1115, %v495
        %v1144 = vadd.f32 %v1124, %v495
        %v1145 = vadd.f32 %v1133, %v495
        %v1146 = vadd.f32 %v1142, %v495
        %v1147 = vxor.u32 %v1143, 2147483648
        %v1148 = vxor.u32 %v1144, 2147483648
        %v1149 = vxor.u32 %v1145, 2147483648
        %v1150 = vxor.u32 %v1146, 2147483648
        %v1151 = vmul.f32 %v1147, 1.442695
        %v1152 = vpow.pop %v1151
        %v1153 = vmul.f32 %v1148, 1.442695
        %v1154 = vpow.pop %v1153
        %v1155 = vmul.f32 %v1149, 1.442695
        %v1156 = vpow.pop %v1155
        %v1157 = vmul.f32 %v1150, 1.442695
        %v1158 = vpow.pop %v1157
        %v1159 = vadd.f32 %v1152, 1.0
        %v1160 = vadd.f32 %v1154, 1.0
        %v1161 = vadd.f32 %v1156, 1.0
        %v1162 = vadd.f32 %v1158, 1.0
        %v1163 = vrcp.pop %v1159
        %v1164 = vmul.f32 1.0, %v1163
        %v1165 = vrcp.pop %v1160
        %v1166 = vmul.f32 1.0, %v1165
        %v1167 = vrcp.pop %v1161
        %v1168 = vmul.f32 1.0, %v1167
        %v1169 = vrcp.pop %v1162
        %v1170 = vmul.f32 1.0, %v1169
        %v1175 = vcombine.low %v1164, %v1166
        %v1176 = vcombine.low %v1168, %v1170
        %v1178 = vunpack.c.l.s4 1966171168
        %v1179 = vunpack.c.0.s8 %v1178
        %v1180 = vlaneseq
        %v1181 = vshrl.u32 %v1180, 7
        %v1182 = vsub.s32 %v1179, %v1181
        %v1183 = vrot.slane %v1175, %v1182
        %v1185 = vunpack.c.l.s4 1966171168
        %v1186 = vunpack.c.0.s8 %v1185
        %v1187 = vlaneseq
        %v1188 = vshrl.u32 %v1187, 7
        %v1189 = vsub.s32 %v1186, %v1188
        %v1190 = vrot.slane %v1176, %v1189
        %v1191 = vcombine.low %v1183, %v1190
        %v1193 = vunpack.c.l.s4 1966171168
        %v1194 = vunpack.c.0.s8 %v1193
        %v1195 = vlaneseq
        %v1196 = vshrl.u32 %v1195, 7
        %v1197 = vsub.s32 %v1194, %v1196
        %v1198 = vrot.slane %v1191, %v1197
        %s1200 = scalar_lea.vmem %s166, 8 [#allocation3]
        %1201 = vst.msk [vmem:[%s1200] sm:$0xf] %vm556, %v1198
        %s1202 = scalar_lea.vmem %s171, 96
        %v1203 = vld [vmem:[%s1202] sm:$0x3f]
        %v1204 = vld [vmem:[%s1202 + $0x8] sm:$0x3f]
        %v1205 = vld [vmem:[%s1202 + $0x10] sm:$0x3f]
        %v1206 = vld [vmem:[%s1202 + $0x18] sm:$0x3f]
        %v1208 = vsel %vm212, %v1203, 0
        %v1211 = vsel %vm212, %v1204, 0
        %v1214 = vsel %vm212, %v1205, 0
        %v1217 = vsel %vm212, %v1206, 0
        %1219 = vmatprep.subr.mxu0 %v1211
        %1220 = vmatpush1.msra.mxu0 %v1208
        %1221 = vmatprep.subr.mxu0 0.0
        %1222 = vmatpush1.msra.mxu0 0.0
        %1223 = vmatprep.subr.mxu0 0.0
        %1224 = vmatpush1.msra.mxu0 0.0
        %1225 = vmatprep.subr.mxu0 0.0
        %1226 = vmatpush1.msra.mxu0 0.0
        %1227 = vmatprep.subr.mxu0 0.0
        %1228 = vmatpush1.msra.mxu0 0.0
        %1229 = vmatprep.subr.mxu0 0.0
        %1230 = vmatpush1.msra.mxu0 0.0
        %1231 = vmatprep.subr.mxu0 0.0
        %1232 = vmatpush1.msra.mxu0 0.0
        %1233 = vmatprep.subr.mxu0 0.0
        %1234 = vmatpush1.msra.mxu0 0.0
        %1235 = vmatprep.subr.mxu0 0.0
        %1236 = vmatpush1.msra.mxu0 0.0
        %1237 = vmatprep.subr.mxu0 0.0
        %1238 = vmatpush1.msra.mxu0 0.0
        %1239 = vmatprep.subr.mxu0 0.0
        %1240 = vmatpush1.msra.mxu0 0.0
        %1241 = vmatprep.subr.mxu0 0.0
        %1242 = vmatpush1.msra.mxu0 0.0
        %1243 = vmatprep.subr.mxu0 0.0
        %1244 = vmatpush1.msra.mxu0 0.0
        %1245 = vmatprep.subr.mxu0 0.0
        %1246 = vmatpush1.msra.mxu0 0.0
        %1247 = vmatprep.subr.mxu0 0.0
        %1248 = vmatpush1.msra.mxu0 0.0
        %1249 = vmatprep.subr.mxu0 0.0
        %1250 = vmatpush1.msra.mxu0 0.0
        %1251 = vmatprep.subr.mxu0 0.0
        %1252 = vmatpush1.msra.mxu0 0.0
        %1253 = vmatprep.subr.mxu0 0.0
        %1254 = vmatpush1.msra.mxu0 0.0
        %1255 = vmatprep.subr.mxu0 0.0
        %1256 = vmatpush1.msra.mxu0 0.0
        %1257 = vmatprep.subr.mxu0 0.0
        %1258 = vmatpush1.msra.mxu0 0.0
        %1259 = vmatprep.subr.mxu0 0.0
        %1260 = vmatpush1.msra.mxu0 0.0
        %1261 = vmatprep.subr.mxu0 0.0
        %1262 = vmatpush1.msra.mxu0 0.0
        %1263 = vmatprep.subr.mxu0 0.0
        %1264 = vmatpush1.msra.mxu0 0.0
        %1265 = vmatprep.subr.mxu0 0.0
        %1266 = vmatpush1.msra.mxu0 0.0
        %1267 = vmatprep.subr.mxu0 0.0
        %1268 = vmatpush1.msra.mxu0 0.0
        %1269 = vmatprep.subr.mxu0 0.0
        %1270 = vmatpush1.msra.mxu0 0.0
        %1271 = vmatprep.subr.mxu0 0.0
        %1272 = vmatpush1.msra.mxu0 0.0
        %1273 = vmatprep.subr.mxu0 0.0
        %1274 = vmatpush1.msra.mxu0 0.0
        %1275 = vmatprep.subr.mxu0 0.0
        %1276 = vmatpush1.msra.mxu0 0.0
        %1277 = vmatprep.subr.mxu0 0.0
        %1278 = vmatpush1.msra.mxu0 0.0
        %1279 = vmatprep.subr.mxu0 0.0
        %1280 = vmatpush1.msra.mxu0 0.0
        %1281 = vmatprep.subr.mxu0 0.0
        %1282 = vmatpush1.msra.mxu0 0.0
        %1283 = vmatprep.mubr.f32.mxu0 0.0
        %1284 = vmatmul.mubr.f32.gmra.mrb[0].mxu0 %v204
        %v1285 = vpop.f32.mrb[0].mxu0
        %v1286 = vadd.f32 %v186, %v1285
        %v1287 = vpop.f32.mrb[0].mxu0
        %v1288 = vadd.f32 %v186, %v1287
        %1289 = vmatprep.mubr.f32.mxu0 0.0
        %1290 = vmatmul.mubr.f32.gmra.mrb[0].mxu0 %v206
        %v1291 = vpop.f32.mrb[0].mxu0
        %v1292 = vadd.f32 %v191, %v1291
        %v1293 = vpop.f32.mrb[0].mxu0
        %v1294 = vadd.f32 %v191, %v1293
        %1295 = vmatprep.mubr.f32.mxu0 0.0
        %1296 = vmatmul.mubr.f32.gmra.mrb[0].mxu0 %v208
        %v1297 = vpop.f32.mrb[0].mxu0
        %v1298 = vadd.f32 %v196, %v1297
        %v1299 = vpop.f32.mrb[0].mxu0
        %v1300 = vadd.f32 %v196, %v1299
        %1301 = vmatprep.mubr.f32.mxu0 0.0
        %1302 = vmatmul.mubr.f32.gmra.mrb[0].mxu0 %v210
        %v1303 = vpop.f32.mrb[0].mxu0
        %v1304 = vadd.f32 %v201, %v1303
        %v1305 = vpop.f32.mrb[0].mxu0
        %v1306 = vadd.f32 %v201, %v1305
        %1307 = vdwg.mxu0
        %1308 = vmatprep.subr.mxu0 %v1217
        %1309 = vmatpush1.msra.mxu0 %v1214
        %1310 = vmatprep.subr.mxu0 0.0
        %1311 = vmatpush1.msra.mxu0 0.0
        %1312 = vmatprep.subr.mxu0 0.0
        %1313 = vmatpush1.msra.mxu0 0.0
        %1314 = vmatprep.subr.mxu0 0.0
        %1315 = vmatpush1.msra.mxu0 0.0
        %1316 = vmatprep.subr.mxu0 0.0
        %1317 = vmatpush1.msra.mxu0 0.0
        %1318 = vmatprep.subr.mxu0 0.0
        %1319 = vmatpush1.msra.mxu0 0.0
        %1320 = vmatprep.subr.mxu0 0.0
        %1321 = vmatpush1.msra.mxu0 0.0
        %1322 = vmatprep.subr.mxu0 0.0
        %1323 = vmatpush1.msra.mxu0 0.0
        %1324 = vmatprep.subr.mxu0 0.0
        %1325 = vmatpush1.msra.mxu0 0.0
        %1326 = vmatprep.subr.mxu0 0.0
        %1327 = vmatpush1.msra.mxu0 0.0
        %1328 = vmatprep.subr.mxu0 0.0
        %1329 = vmatpush1.msra.mxu0 0.0
        %1330 = vmatprep.subr.mxu0 0.0
        %1331 = vmatpush1.msra.mxu0 0.0
        %1332 = vmatprep.subr.mxu0 0.0
        %1333 = vmatpush1.msra.mxu0 0.0
        %1334 = vmatprep.subr.mxu0 0.0
        %1335 = vmatpush1.msra.mxu0 0.0
        %1336 = vmatprep.subr.mxu0 0.0
        %1337 = vmatpush1.msra.mxu0 0.0
        %1338 = vmatprep.subr.mxu0 0.0
        %1339 = vmatpush1.msra.mxu0 0.0
        %1340 = vmatprep.subr.mxu0 0.0
        %1341 = vmatpush1.msra.mxu0 0.0
        %1342 = vmatprep.subr.mxu0 0.0
        %1343 = vmatpush1.msra.mxu0 0.0
        %1344 = vmatprep.subr.mxu0 0.0
        %1345 = vmatpush1.msra.mxu0 0.0
        %1346 = vmatprep.subr.mxu0 0.0
        %1347 = vmatpush1.msra.mxu0 0.0
        %1348 = vmatprep.subr.mxu0 0.0
        %1349 = vmatpush1.msra.mxu0 0.0
        %1350 = vmatprep.subr.mxu0 0.0
        %1351 = vmatpush1.msra.mxu0 0.0
        %1352 = vmatprep.subr.mxu0 0.0
        %1353 = vmatpush1.msra.mxu0 0.0
        %1354 = vmatprep.subr.mxu0 0.0
        %1355 = vmatpush1.msra.mxu0 0.0
        %1356 = vmatprep.subr.mxu0 0.0
        %1357 = vmatpush1.msra.mxu0 0.0
        %1358 = vmatprep.subr.mxu0 0.0
        %1359 = vmatpush1.msra.mxu0 0.0
        %1360 = vmatprep.subr.mxu0 0.0
        %1361 = vmatpush1.msra.mxu0 0.0
        %1362 = vmatprep.subr.mxu0 0.0
        %1363 = vmatpush1.msra.mxu0 0.0
        %1364 = vmatprep.subr.mxu0 0.0
        %1365 = vmatpush1.msra.mxu0 0.0
        %1366 = vmatprep.subr.mxu0 0.0
        %1367 = vmatpush1.msra.mxu0 0.0
        %1368 = vmatprep.subr.mxu0 0.0
        %1369 = vmatpush1.msra.mxu0 0.0
        %1370 = vmatprep.subr.mxu0 0.0
        %1371 = vmatpush1.msra.mxu0 0.0
        %1372 = vmatprep.mubr.f32.mxu0 0.0
        %1373 = vmatmul.mubr.f32.gmra.mrb[0].mxu0 %v204
        %v1374 = vpop.f32.mrb[0].mxu0
        %v1375 = vadd.f32 %v186, %v1374
        %v1376 = vpop.f32.mrb[0].mxu0
        %v1377 = vadd.f32 %v186, %v1376
        %1378 = vmatprep.mubr.f32.mxu0 0.0
        %1379 = vmatmul.mubr.f32.gmra.mrb[0].mxu0 %v206
        %v1380 = vpop.f32.mrb[0].mxu0
        %v1381 = vadd.f32 %v191, %v1380
        %v1382 = vpop.f32.mrb[0].mxu0
        %v1383 = vadd.f32 %v191, %v1382
        %1384 = vmatprep.mubr.f32.mxu0 0.0
        %1385 = vmatmul.mubr.f32.gmra.mrb[0].mxu0 %v208
        %v1386 = vpop.f32.mrb[0].mxu0
        %v1387 = vadd.f32 %v196, %v1386
        %v1388 = vpop.f32.mrb[0].mxu0
        %v1389 = vadd.f32 %v196, %v1388
        %1390 = vmatprep.mubr.f32.mxu0 0.0
        %1391 = vmatmul.mubr.f32.gmra.mrb[0].mxu0 %v210
        %v1392 = vpop.f32.mrb[0].mxu0
        %v1393 = vadd.f32 %v201, %v1392
        %v1394 = vpop.f32.mrb[0].mxu0
        %v1395 = vadd.f32 %v201, %v1394
        %1396 = vdwg.mxu0
        %v1397 = vmax.f32 %v1286, 0.0
        %v1398 = vmax.f32 %v1288, 0.0
        %v1399 = vmax.f32 %v1375, 0.0
        %v1400 = vmax.f32 %v1377, 0.0
        %v1401 = vmax.f32 %v1292, 0.0
        %v1402 = vmax.f32 %v1294, 0.0
        %v1403 = vmax.f32 %v1381, 0.0
        %v1404 = vmax.f32 %v1383, 0.0
        %v1405 = vmax.f32 %v1298, 0.0
        %v1406 = vmax.f32 %v1300, 0.0
        %v1407 = vmax.f32 %v1387, 0.0
        %v1408 = vmax.f32 %v1389, 0.0
        %v1409 = vmax.f32 %v1304, 0.0
        %v1410 = vmax.f32 %v1306, 0.0
        %v1411 = vmax.f32 %v1393, 0.0
        %v1412 = vmax.f32 %v1395, 0.0
        %v1413 = vmul.f32 %v1397, %v421
        %v1414 = vmul.f32 %v1398, %v421
        %v1415 = vmul.f32 %v1399, %v421
        %v1416 = vmul.f32 %v1400, %v421
        %v1417 = vmul.f32 %v1401, %v425
        %v1418 = vmul.f32 %v1402, %v425
        %v1419 = vmul.f32 %v1403, %v425
        %v1420 = vmul.f32 %v1404, %v425
        %v1421 = vmul.f32 %v1405, %v429
        %v1422 = vmul.f32 %v1406, %v429
        %v1423 = vmul.f32 %v1407, %v429
        %v1424 = vmul.f32 %v1408, %v429
        %v1425 = vmul.f32 %v1409, %v433
        %v1426 = vmul.f32 %v1410, %v433
        %v1427 = vmul.f32 %v1411, %v433
        %v1428 = vmul.f32 %v1412, %v433
        %v1429 = vadd.f32 %v1413, %v1417
        %v1430 = vadd.f32 %v1429, %v1421
        %v1431 = vadd.f32 %v1430, %v1425
        %v1432 = vrot.slane %v1431, 4
        %v1433 = vadd.f32 %v1431, %v1432
        %v1434 = vrot.slane %v1433, 2
        %v1435 = vadd.f32 %v1433, %v1434
        %v1436 = vrot.slane %v1435, 1
        %v1437 = vadd.f32 %v1435, %v1436
        %v1438 = vadd.f32 %v1414, %v1418
        %v1439 = vadd.f32 %v1438, %v1422
        %v1440 = vadd.f32 %v1439, %v1426
        %v1441 = vrot.slane %v1440, 4
        %v1442 = vadd.f32 %v1440, %v1441
        %v1443 = vrot.slane %v1442, 2
        %v1444 = vadd.f32 %v1442, %v1443
        %v1445 = vrot.slane %v1444, 1
        %v1446 = vadd.f32 %v1444, %v1445
        %v1447 = vadd.f32 %v1415, %v1419
        %v1448 = vadd.f32 %v1447, %v1423
        %v1449 = vadd.f32 %v1448, %v1427
        %v1450 = vrot.slane %v1449, 4
        %v1451 = vadd.f32 %v1449, %v1450
        %v1452 = vrot.slane %v1451, 2
        %v1453 = vadd.f32 %v1451, %v1452
        %v1454 = vrot.slane %v1453, 1
        %v1455 = vadd.f32 %v1453, %v1454
        %v1456 = vadd.f32 %v1416, %v1420
        %v1457 = vadd.f32 %v1456, %v1424
        %v1458 = vadd.f32 %v1457, %v1428
        %v1459 = vrot.slane %v1458, 4
        %v1460 = vadd.f32 %v1458, %v1459
        %v1461 = vrot.slane %v1460, 2
        %v1462 = vadd.f32 %v1460, %v1461
        %v1463 = vrot.slane %v1462, 1
        %v1464 = vadd.f32 %v1462, %v1463
        %v1465 = vadd.f32 %v1437, %v495
        %v1466 = vadd.f32 %v1446, %v495
        %v1467 = vadd.f32 %v1455, %v495
        %v1468 = vadd.f32 %v1464, %v495
        %v1469 = vxor.u32 %v1465, 2147483648
        %v1470 = vxor.u32 %v1466, 2147483648
        %v1471 = vxor.u32 %v1467, 2147483648
        %v1472 = vxor.u32 %v1468, 2147483648
        %v1473 = vmul.f32 %v1469, 1.442695
        %v1474 = vpow.pop %v1473
        %v1475 = vmul.f32 %v1470, 1.442695
        %v1476 = vpow.pop %v1475
        %v1477 = vmul.f32 %v1471, 1.442695
        %v1478 = vpow.pop %v1477
        %v1479 = vmul.f32 %v1472, 1.442695
        %v1480 = vpow.pop %v1479
        %v1481 = vadd.f32 %v1474, 1.0
        %v1482 = vadd.f32 %v1476, 1.0
        %v1483 = vadd.f32 %v1478, 1.0
        %v1484 = vadd.f32 %v1480, 1.0
        %v1485 = vrcp.pop %v1481
        %v1486 = vmul.f32 1.0, %v1485
        %v1487 = vrcp.pop %v1482
        %v1488 = vmul.f32 1.0, %v1487
        %v1489 = vrcp.pop %v1483
        %v1490 = vmul.f32 1.0, %v1489
        %v1491 = vrcp.pop %v1484
        %v1492 = vmul.f32 1.0, %v1491
        %v1497 = vcombine.low %v1486, %v1488
        %v1498 = vcombine.low %v1490, %v1492
        %v1500 = vunpack.c.l.s4 1966171168
        %v1501 = vunpack.c.0.s8 %v1500
        %v1502 = vlaneseq
        %v1503 = vshrl.u32 %v1502, 7
        %v1504 = vsub.s32 %v1501, %v1503
        %v1505 = vrot.slane %v1497, %v1504
        %v1507 = vunpack.c.l.s4 1966171168
        %v1508 = vunpack.c.0.s8 %v1507
        %v1509 = vlaneseq
        %v1510 = vshrl.u32 %v1509, 7
        %v1511 = vsub.s32 %v1508, %v1510
        %v1512 = vrot.slane %v1498, %v1511
        %v1513 = vcombine.low %v1505, %v1512
        %v1515 = vunpack.c.l.s4 1966171168
        %v1516 = vunpack.c.0.s8 %v1515
        %v1517 = vlaneseq
        %v1518 = vshrl.u32 %v1517, 7
        %v1519 = vsub.s32 %v1516, %v1518
        %v1520 = vrot.slane %v1513, %v1519
        %s1522 = scalar_lea.vmem %s166, 12 [#allocation3]
        %1523 = vst.msk [vmem:[%s1522] sm:$0xf] %vm556, %v1520
        %s1524 = scalar_lea.vmem %s171, 128
        %v1525 = vld [vmem:[%s1524] sm:$0x3f]
        %v1526 = vld [vmem:[%s1524 + $0x8] sm:$0x3f]
        %v1527 = vld [vmem:[%s1524 + $0x10] sm:$0x3f]
        %v1528 = vld [vmem:[%s1524 + $0x18] sm:$0x3f]
        %v1530 = vsel %vm212, %v1525, 0
        %v1533 = vsel %vm212, %v1526, 0
        %v1536 = vsel %vm212, %v1527, 0
        %v1539 = vsel %vm212, %v1528, 0
        %1541 = vmatprep.subr.mxu0 %v1533
        %1542 = vmatpush1.msra.mxu0 %v1530
        %1543 = vmatprep.subr.mxu0 0.0
        %1544 = vmatpush1.msra.mxu0 0.0
        %1545 = vmatprep.subr.mxu0 0.0
        %1546 = vmatpush1.msra.mxu0 0.0
        %1547 = vmatprep.subr.mxu0 0.0
        %1548 = vmatpush1.msra.mxu0 0.0
        %1549 = vmatprep.subr.mxu0 0.0
        %1550 = vmatpush1.msra.mxu0 0.0
        %1551 = vmatprep.subr.mxu0 0.0
        %1552 = vmatpush1.msra.mxu0 0.0
        %1553 = vmatprep.subr.mxu0 0.0
        %1554 = vmatpush1.msra.mxu0 0.0
        %1555 = vmatprep.subr.mxu0 0.0
        %1556 = vmatpush1.msra.mxu0 0.0
        %1557 = vmatprep.subr.mxu0 0.0
        %1558 = vmatpush1.msra.mxu0 0.0
        %1559 = vmatprep.subr.mxu0 0.0
        %1560 = vmatpush1.msra.mxu0 0.0
        %1561 = vmatprep.subr.mxu0 0.0
        %1562 = vmatpush1.msra.mxu0 0.0
        %1563 = vmatprep.subr.mxu0 0.0
        %1564 = vmatpush1.msra.mxu0 0.0
        %1565 = vmatprep.subr.mxu0 0.0
        %1566 = vmatpush1.msra.mxu0 0.0
        %1567 = vmatprep.subr.mxu0 0.0
        %1568 = vmatpush1.msra.mxu0 0.0
        %1569 = vmatprep.subr.mxu0 0.0
        %1570 = vmatpush1.msra.mxu0 0.0
        %1571 = vmatprep.subr.mxu0 0.0
        %1572 = vmatpush1.msra.mxu0 0.0
        %1573 = vmatprep.subr.mxu0 0.0
        %1574 = vmatpush1.msra.mxu0 0.0
        %1575 = vmatprep.subr.mxu0 0.0
        %1576 = vmatpush1.msra.mxu0 0.0
        %1577 = vmatprep.subr.mxu0 0.0
        %1578 = vmatpush1.msra.mxu0 0.0
        %1579 = vmatprep.subr.mxu0 0.0
        %1580 = vmatpush1.msra.mxu0 0.0
        %1581 = vmatprep.subr.mxu0 0.0
        %1582 = vmatpush1.msra.mxu0 0.0
        %1583 = vmatprep.subr.mxu0 0.0
        %1584 = vmatpush1.msra.mxu0 0.0
        %1585 = vmatprep.subr.mxu0 0.0
        %1586 = vmatpush1.msra.mxu0 0.0
        %1587 = vmatprep.subr.mxu0 0.0
        %1588 = vmatpush1.msra.mxu0 0.0
        %1589 = vmatprep.subr.mxu0 0.0
        %1590 = vmatpush1.msra.mxu0 0.0
        %1591 = vmatprep.subr.mxu0 0.0
        %1592 = vmatpush1.msra.mxu0 0.0
        %1593 = vmatprep.subr.mxu0 0.0
        %1594 = vmatpush1.msra.mxu0 0.0
        %1595 = vmatprep.subr.mxu0 0.0
        %1596 = vmatpush1.msra.mxu0 0.0
        %1597 = vmatprep.subr.mxu0 0.0
        %1598 = vmatpush1.msra.mxu0 0.0
        %1599 = vmatprep.subr.mxu0 0.0
        %1600 = vmatpush1.msra.mxu0 0.0
        %1601 = vmatprep.subr.mxu0 0.0
        %1602 = vmatpush1.msra.mxu0 0.0
        %1603 = vmatprep.subr.mxu0 0.0
        %1604 = vmatpush1.msra.mxu0 0.0
        %1605 = vmatprep.mubr.f32.mxu0 0.0
        %1606 = vmatmul.mubr.f32.gmra.mrb[0].mxu0 %v204
        %v1607 = vpop.f32.mrb[0].mxu0
        %v1608 = vadd.f32 %v186, %v1607
        %v1609 = vpop.f32.mrb[0].mxu0
        %v1610 = vadd.f32 %v186, %v1609
        %1611 = vmatprep.mubr.f32.mxu0 0.0
        %1612 = vmatmul.mubr.f32.gmra.mrb[0].mxu0 %v206
        %v1613 = vpop.f32.mrb[0].mxu0
        %v1614 = vadd.f32 %v191, %v1613
        %v1615 = vpop.f32.mrb[0].mxu0
        %v1616 = vadd.f32 %v191, %v1615
        %1617 = vmatprep.mubr.f32.mxu0 0.0
        %1618 = vmatmul.mubr.f32.gmra.mrb[0].mxu0 %v208
        %v1619 = vpop.f32.mrb[0].mxu0
        %v1620 = vadd.f32 %v196, %v1619
        %v1621 = vpop.f32.mrb[0].mxu0
        %v1622 = vadd.f32 %v196, %v1621
        %1623 = vmatprep.mubr.f32.mxu0 0.0
        %1624 = vmatmul.mubr.f32.gmra.mrb[0].mxu0 %v210
        %v1625 = vpop.f32.mrb[0].mxu0
        %v1626 = vadd.f32 %v201, %v1625
        %v1627 = vpop.f32.mrb[0].mxu0
        %v1628 = vadd.f32 %v201, %v1627
        %1629 = vdwg.mxu0
        %1630 = vmatprep.subr.mxu0 %v1539
        %1631 = vmatpush1.msra.mxu0 %v1536
        %1632 = vmatprep.subr.mxu0 0.0
        %1633 = vmatpush1.msra.mxu0 0.0
        %1634 = vmatprep.subr.mxu0 0.0
        %1635 = vmatpush1.msra.mxu0 0.0
        %1636 = vmatprep.subr.mxu0 0.0
        %1637 = vmatpush1.msra.mxu0 0.0
        %1638 = vmatprep.subr.mxu0 0.0
        %1639 = vmatpush1.msra.mxu0 0.0
        %1640 = vmatprep.subr.mxu0 0.0
        %1641 = vmatpush1.msra.mxu0 0.0
        %1642 = vmatprep.subr.mxu0 0.0
        %1643 = vmatpush1.msra.mxu0 0.0
        %1644 = vmatprep.subr.mxu0 0.0
        %1645 = vmatpush1.msra.mxu0 0.0
        %1646 = vmatprep.subr.mxu0 0.0
        %1647 = vmatpush1.msra.mxu0 0.0
        %1648 = vmatprep.subr.mxu0 0.0
        %1649 = vmatpush1.msra.mxu0 0.0
        %1650 = vmatprep.subr.mxu0 0.0
        %1651 = vmatpush1.msra.mxu0 0.0
        %1652 = vmatprep.subr.mxu0 0.0
        %1653 = vmatpush1.msra.mxu0 0.0
        %1654 = vmatprep.subr.mxu0 0.0
        %1655 = vmatpush1.msra.mxu0 0.0
        %1656 = vmatprep.subr.mxu0 0.0
        %1657 = vmatpush1.msra.mxu0 0.0
        %1658 = vmatprep.subr.mxu0 0.0
        %1659 = vmatpush1.msra.mxu0 0.0
        %1660 = vmatprep.subr.mxu0 0.0
        %1661 = vmatpush1.msra.mxu0 0.0
        %1662 = vmatprep.subr.mxu0 0.0
        %1663 = vmatpush1.msra.mxu0 0.0
        %1664 = vmatprep.subr.mxu0 0.0
        %1665 = vmatpush1.msra.mxu0 0.0
        %1666 = vmatprep.subr.mxu0 0.0
        %1667 = vmatpush1.msra.mxu0 0.0
        %1668 = vmatprep.subr.mxu0 0.0
        %1669 = vmatpush1.msra.mxu0 0.0
        %1670 = vmatprep.subr.mxu0 0.0
        %1671 = vmatpush1.msra.mxu0 0.0
        %1672 = vmatprep.subr.mxu0 0.0
        %1673 = vmatpush1.msra.mxu0 0.0
        %1674 = vmatprep.subr.mxu0 0.0
        %1675 = vmatpush1.msra.mxu0 0.0
        %1676 = vmatprep.subr.mxu0 0.0
        %1677 = vmatpush1.msra.mxu0 0.0
        %1678 = vmatprep.subr.mxu0 0.0
        %1679 = vmatpush1.msra.mxu0 0.0
        %1680 = vmatprep.subr.mxu0 0.0
        %1681 = vmatpush1.msra.mxu0 0.0
        %1682 = vmatprep.subr.mxu0 0.0
        %1683 = vmatpush1.msra.mxu0 0.0
        %1684 = vmatprep.subr.mxu0 0.0
        %1685 = vmatpush1.msra.mxu0 0.0
        %1686 = vmatprep.subr.mxu0 0.0
        %1687 = vmatpush1.msra.mxu0 0.0
        %1688 = vmatprep.subr.mxu0 0.0
        %1689 = vmatpush1.msra.mxu0 0.0
        %1690 = vmatprep.subr.mxu0 0.0
        %1691 = vmatpush1.msra.mxu0 0.0
        %1692 = vmatprep.subr.mxu0 0.0
        %1693 = vmatpush1.msra.mxu0 0.0
        %1694 = vmatprep.mubr.f32.mxu0 0.0
        %1695 = vmatmul.mubr.f32.gmra.mrb[0].mxu0 %v204
        %v1696 = vpop.f32.mrb[0].mxu0
        %v1697 = vadd.f32 %v186, %v1696
        %v1698 = vpop.f32.mrb[0].mxu0
        %v1699 = vadd.f32 %v186, %v1698
        %1700 = vmatprep.mubr.f32.mxu0 0.0
        %1701 = vmatmul.mubr.f32.gmra.mrb[0].mxu0 %v206
        %v1702 = vpop.f32.mrb[0].mxu0
        %v1703 = vadd.f32 %v191, %v1702
        %v1704 = vpop.f32.mrb[0].mxu0
        %v1705 = vadd.f32 %v191, %v1704
        %1706 = vmatprep.mubr.f32.mxu0 0.0
        %1707 = vmatmul.mubr.f32.gmra.mrb[0].mxu0 %v208
        %v1708 = vpop.f32.mrb[0].mxu0
        %v1709 = vadd.f32 %v196, %v1708
        %v1710 = vpop.f32.mrb[0].mxu0
        %v1711 = vadd.f32 %v196, %v1710
        %1712 = vmatprep.mubr.f32.mxu0 0.0
        %1713 = vmatmul.mubr.f32.gmra.mrb[0].mxu0 %v210
        %v1714 = vpop.f32.mrb[0].mxu0
        %v1715 = vadd.f32 %v201, %v1714
        %v1716 = vpop.f32.mrb[0].mxu0
        %v1717 = vadd.f32 %v201, %v1716
        %1718 = vdwg.mxu0
        %v1719 = vmax.f32 %v1608, 0.0
        %v1720 = vmax.f32 %v1610, 0.0
        %v1721 = vmax.f32 %v1697, 0.0
        %v1722 = vmax.f32 %v1699, 0.0
        %v1723 = vmax.f32 %v1614, 0.0
        %v1724 = vmax.f32 %v1616, 0.0
        %v1725 = vmax.f32 %v1703, 0.0
        %v1726 = vmax.f32 %v1705, 0.0
        %v1727 = vmax.f32 %v1620, 0.0
        %v1728 = vmax.f32 %v1622, 0.0
        %v1729 = vmax.f32 %v1709, 0.0
        %v1730 = vmax.f32 %v1711, 0.0
        %v1731 = vmax.f32 %v1626, 0.0
        %v1732 = vmax.f32 %v1628, 0.0
        %v1733 = vmax.f32 %v1715, 0.0
        %v1734 = vmax.f32 %v1717, 0.0
        %v1735 = vmul.f32 %v1719, %v421
        %v1736 = vmul.f32 %v1720, %v421
        %v1737 = vmul.f32 %v1721, %v421
        %v1738 = vmul.f32 %v1722, %v421
        %v1739 = vmul.f32 %v1723, %v425
        %v1740 = vmul.f32 %v1724, %v425
        %v1741 = vmul.f32 %v1725, %v425
        %v1742 = vmul.f32 %v1726, %v425
        %v1743 = vmul.f32 %v1727, %v429
        %v1744 = vmul.f32 %v1728, %v429
        %v1745 = vmul.f32 %v1729, %v429
        %v1746 = vmul.f32 %v1730, %v429
        %v1747 = vmul.f32 %v1731, %v433
        %v1748 = vmul.f32 %v1732, %v433
        %v1749 = vmul.f32 %v1733, %v433
        %v1750 = vmul.f32 %v1734, %v433
        %v1751 = vadd.f32 %v1735, %v1739
        %v1752 = vadd.f32 %v1751, %v1743
        %v1753 = vadd.f32 %v1752, %v1747
        %v1754 = vrot.slane %v1753, 4
        %v1755 = vadd.f32 %v1753, %v1754
        %v1756 = vrot.slane %v1755, 2
        %v1757 = vadd.f32 %v1755, %v1756
        %v1758 = vrot.slane %v1757, 1
        %v1759 = vadd.f32 %v1757, %v1758
        %v1760 = vadd.f32 %v1736, %v1740
        %v1761 = vadd.f32 %v1760, %v1744
        %v1762 = vadd.f32 %v1761, %v1748
        %v1763 = vrot.slane %v1762, 4
        %v1764 = vadd.f32 %v1762, %v1763
        %v1765 = vrot.slane %v1764, 2
        %v1766 = vadd.f32 %v1764, %v1765
        %v1767 = vrot.slane %v1766, 1
        %v1768 = vadd.f32 %v1766, %v1767
        %v1769 = vadd.f32 %v1737, %v1741
        %v1770 = vadd.f32 %v1769, %v1745
        %v1771 = vadd.f32 %v1770, %v1749
        %v1772 = vrot.slane %v1771, 4
        %v1773 = vadd.f32 %v1771, %v1772
        %v1774 = vrot.slane %v1773, 2
        %v1775 = vadd.f32 %v1773, %v1774
        %v1776 = vrot.slane %v1775, 1
        %v1777 = vadd.f32 %v1775, %v1776
        %v1778 = vadd.f32 %v1738, %v1742
        %v1779 = vadd.f32 %v1778, %v1746
        %v1780 = vadd.f32 %v1779, %v1750
        %v1781 = vrot.slane %v1780, 4
        %v1782 = vadd.f32 %v1780, %v1781
        %v1783 = vrot.slane %v1782, 2
        %v1784 = vadd.f32 %v1782, %v1783
        %v1785 = vrot.slane %v1784, 1
        %v1786 = vadd.f32 %v1784, %v1785
        %v1787 = vadd.f32 %v1759, %v495
        %v1788 = vadd.f32 %v1768, %v495
        %v1789 = vadd.f32 %v1777, %v495
        %v1790 = vadd.f32 %v1786, %v495
        %v1791 = vxor.u32 %v1787, 2147483648
        %v1792 = vxor.u32 %v1788, 2147483648
        %v1793 = vxor.u32 %v1789, 2147483648
        %v1794 = vxor.u32 %v1790, 2147483648
        %v1795 = vmul.f32 %v1791, 1.442695
        %v1796 = vpow.pop %v1795
        %v1797 = vmul.f32 %v1792, 1.442695
        %v1798 = vpow.pop %v1797
        %v1799 = vmul.f32 %v1793, 1.442695
        %v1800 = vpow.pop %v1799
        %v1801 = vmul.f32 %v1794, 1.442695
        %v1802 = vpow.pop %v1801
        %v1803 = vadd.f32 %v1796, 1.0
        %v1804 = vadd.f32 %v1798, 1.0
        %v1805 = vadd.f32 %v1800, 1.0
        %v1806 = vadd.f32 %v1802, 1.0
        %v1807 = vrcp.pop %v1803
        %v1808 = vmul.f32 1.0, %v1807
        %v1809 = vrcp.pop %v1804
        %v1810 = vmul.f32 1.0, %v1809
        %v1811 = vrcp.pop %v1805
        %v1812 = vmul.f32 1.0, %v1811
        %v1813 = vrcp.pop %v1806
        %v1814 = vmul.f32 1.0, %v1813
        %v1819 = vcombine.low %v1808, %v1810
        %v1820 = vcombine.low %v1812, %v1814
        %v1822 = vunpack.c.l.s4 1966171168
        %v1823 = vunpack.c.0.s8 %v1822
        %v1824 = vlaneseq
        %v1825 = vshrl.u32 %v1824, 7
        %v1826 = vsub.s32 %v1823, %v1825
        %v1827 = vrot.slane %v1819, %v1826
        %v1829 = vunpack.c.l.s4 1966171168
        %v1830 = vunpack.c.0.s8 %v1829
        %v1831 = vlaneseq
        %v1832 = vshrl.u32 %v1831, 7
        %v1833 = vsub.s32 %v1830, %v1832
        %v1834 = vrot.slane %v1820, %v1833
        %v1835 = vcombine.low %v1827, %v1834
        %v1837 = vunpack.c.l.s4 1966171168
        %v1838 = vunpack.c.0.s8 %v1837
        %v1839 = vlaneseq
        %v1840 = vshrl.u32 %v1839, 7
        %v1841 = vsub.s32 %v1838, %v1840
        %v1842 = vrot.slane %v1835, %v1841
        %s1844 = scalar_lea.vmem %s166, 16 [#allocation3]
        %1845 = vst.msk [vmem:[%s1844] sm:$0xf] %vm556, %v1842
        %s1846 = scalar_lea.vmem %s171, 160
        %v1847 = vld [vmem:[%s1846] sm:$0x3f]
        %v1848 = vld [vmem:[%s1846 + $0x8] sm:$0x3f]
        %v1849 = vld [vmem:[%s1846 + $0x10] sm:$0x3f]
        %v1850 = vld [vmem:[%s1846 + $0x18] sm:$0x3f]
        %v1852 = vsel %vm212, %v1847, 0
        %v1855 = vsel %vm212, %v1848, 0
        %v1858 = vsel %vm212, %v1849, 0
        %v1861 = vsel %vm212, %v1850, 0
        %1863 = vmatprep.subr.mxu0 %v1855
        %1864 = vmatpush1.msra.mxu0 %v1852
        %1865 = vmatprep.subr.mxu0 0.0
        %1866 = vmatpush1.msra.mxu0 0.0
        %1867 = vmatprep.subr.mxu0 0.0
        %1868 = vmatpush1.msra.mxu0 0.0
        %1869 = vmatprep.subr.mxu0 0.0
        %1870 = vmatpush1.msra.mxu0 0.0
        %1871 = vmatprep.subr.mxu0 0.0
        %1872 = vmatpush1.msra.mxu0 0.0
        %1873 = vmatprep.subr.mxu0 0.0
        %1874 = vmatpush1.msra.mxu0 0.0
        %1875 = vmatprep.subr.mxu0 0.0
        %1876 = vmatpush1.msra.mxu0 0.0
        %1877 = vmatprep.subr.mxu0 0.0
        %1878 = vmatpush1.msra.mxu0 0.0
        %1879 = vmatprep.subr.mxu0 0.0
        %1880 = vmatpush1.msra.mxu0 0.0
        %1881 = vmatprep.subr.mxu0 0.0
        %1882 = vmatpush1.msra.mxu0 0.0
        %1883 = vmatprep.subr.mxu0 0.0
        %1884 = vmatpush1.msra.mxu0 0.0
        %1885 = vmatprep.subr.mxu0 0.0
        %1886 = vmatpush1.msra.mxu0 0.0
        %1887 = vmatprep.subr.mxu0 0.0
        %1888 = vmatpush1.msra.mxu0 0.0
        %1889 = vmatprep.subr.mxu0 0.0
        %1890 = vmatpush1.msra.mxu0 0.0
        %1891 = vmatprep.subr.mxu0 0.0
        %1892 = vmatpush1.msra.mxu0 0.0
        %1893 = vmatprep.subr.mxu0 0.0
        %1894 = vmatpush1.msra.mxu0 0.0
        %1895 = vmatprep.subr.mxu0 0.0
        %1896 = vmatpush1.msra.mxu0 0.0
        %1897 = vmatprep.subr.mxu0 0.0
        %1898 = vmatpush1.msra.mxu0 0.0
        %1899 = vmatprep.subr.mxu0 0.0
        %1900 = vmatpush1.msra.mxu0 0.0
        %1901 = vmatprep.subr.mxu0 0.0
        %1902 = vmatpush1.msra.mxu0 0.0
        %1903 = vmatprep.subr.mxu0 0.0
        %1904 = vmatpush1.msra.mxu0 0.0
        %1905 = vmatprep.subr.mxu0 0.0
        %1906 = vmatpush1.msra.mxu0 0.0
        %1907 = vmatprep.subr.mxu0 0.0
        %1908 = vmatpush1.msra.mxu0 0.0
        %1909 = vmatprep.subr.mxu0 0.0
        %1910 = vmatpush1.msra.mxu0 0.0
        %1911 = vmatprep.subr.mxu0 0.0
        %1912 = vmatpush1.msra.mxu0 0.0
        %1913 = vmatprep.subr.mxu0 0.0
        %1914 = vmatpush1.msra.mxu0 0.0
        %1915 = vmatprep.subr.mxu0 0.0
        %1916 = vmatpush1.msra.mxu0 0.0
        %1917 = vmatprep.subr.mxu0 0.0
        %1918 = vmatpush1.msra.mxu0 0.0
        %1919 = vmatprep.subr.mxu0 0.0
        %1920 = vmatpush1.msra.mxu0 0.0
        %1921 = vmatprep.subr.mxu0 0.0
        %1922 = vmatpush1.msra.mxu0 0.0
        %1923 = vmatprep.subr.mxu0 0.0
        %1924 = vmatpush1.msra.mxu0 0.0
        %1925 = vmatprep.subr.mxu0 0.0
        %1926 = vmatpush1.msra.mxu0 0.0
        %1927 = vmatprep.mubr.f32.mxu0 0.0
        %1928 = vmatmul.mubr.f32.gmra.mrb[0].mxu0 %v204
        %v1929 = vpop.f32.mrb[0].mxu0
        %v1930 = vadd.f32 %v186, %v1929
        %v1931 = vpop.f32.mrb[0].mxu0
        %v1932 = vadd.f32 %v186, %v1931
        %1933 = vmatprep.mubr.f32.mxu0 0.0
        %1934 = vmatmul.mubr.f32.gmra.mrb[0].mxu0 %v206
        %v1935 = vpop.f32.mrb[0].mxu0
        %v1936 = vadd.f32 %v191, %v1935
        %v1937 = vpop.f32.mrb[0].mxu0
        %v1938 = vadd.f32 %v191, %v1937
        %1939 = vmatprep.mubr.f32.mxu0 0.0
        %1940 = vmatmul.mubr.f32.gmra.mrb[0].mxu0 %v208
        %v1941 = vpop.f32.mrb[0].mxu0
        %v1942 = vadd.f32 %v196, %v1941
        %v1943 = vpop.f32.mrb[0].mxu0
        %v1944 = vadd.f32 %v196, %v1943
        %1945 = vmatprep.mubr.f32.mxu0 0.0
        %1946 = vmatmul.mubr.f32.gmra.mrb[0].mxu0 %v210
        %v1947 = vpop.f32.mrb[0].mxu0
        %v1948 = vadd.f32 %v201, %v1947
        %v1949 = vpop.f32.mrb[0].mxu0
        %v1950 = vadd.f32 %v201, %v1949
        %1951 = vdwg.mxu0
        %1952 = vmatprep.subr.mxu0 %v1861
        %1953 = vmatpush1.msra.mxu0 %v1858
        %1954 = vmatprep.subr.mxu0 0.0
        %1955 = vmatpush1.msra.mxu0 0.0
        %1956 = vmatprep.subr.mxu0 0.0
        %1957 = vmatpush1.msra.mxu0 0.0
        %1958 = vmatprep.subr.mxu0 0.0
        %1959 = vmatpush1.msra.mxu0 0.0
        %1960 = vmatprep.subr.mxu0 0.0
        %1961 = vmatpush1.msra.mxu0 0.0
        %1962 = vmatprep.subr.mxu0 0.0
        %1963 = vmatpush1.msra.mxu0 0.0
        %1964 = vmatprep.subr.mxu0 0.0
        %1965 = vmatpush1.msra.mxu0 0.0
        %1966 = vmatprep.subr.mxu0 0.0
        %1967 = vmatpush1.msra.mxu0 0.0
        %1968 = vmatprep.subr.mxu0 0.0
        %1969 = vmatpush1.msra.mxu0 0.0
        %1970 = vmatprep.subr.mxu0 0.0
        %1971 = vmatpush1.msra.mxu0 0.0
        %1972 = vmatprep.subr.mxu0 0.0
        %1973 = vmatpush1.msra.mxu0 0.0
        %1974 = vmatprep.subr.mxu0 0.0
        %1975 = vmatpush1.msra.mxu0 0.0
        %1976 = vmatprep.subr.mxu0 0.0
        %1977 = vmatpush1.msra.mxu0 0.0
        %1978 = vmatprep.subr.mxu0 0.0
        %1979 = vmatpush1.msra.mxu0 0.0
        %1980 = vmatprep.subr.mxu0 0.0
        %1981 = vmatpush1.msra.mxu0 0.0
        %1982 = vmatprep.subr.mxu0 0.0
        %1983 = vmatpush1.msra.mxu0 0.0
        %1984 = vmatprep.subr.mxu0 0.0
        %1985 = vmatpush1.msra.mxu0 0.0
        %1986 = vmatprep.subr.mxu0 0.0
        %1987 = vmatpush1.msra.mxu0 0.0
        %1988 = vmatprep.subr.mxu0 0.0
        %1989 = vmatpush1.msra.mxu0 0.0
        %1990 = vmatprep.subr.mxu0 0.0
        %1991 = vmatpush1.msra.mxu0 0.0
        %1992 = vmatprep.subr.mxu0 0.0
        %1993 = vmatpush1.msra.mxu0 0.0
        %1994 = vmatprep.subr.mxu0 0.0
        %1995 = vmatpush1.msra.mxu0 0.0
        %1996 = vmatprep.subr.mxu0 0.0
        %1997 = vmatpush1.msra.mxu0 0.0
        %1998 = vmatprep.subr.mxu0 0.0
        %1999 = vmatpush1.msra.mxu0 0.0
        %2000 = vmatprep.subr.mxu0 0.0
        %2001 = vmatpush1.msra.mxu0 0.0
        %2002 = vmatprep.subr.mxu0 0.0
        %2003 = vmatpush1.msra.mxu0 0.0
        %2004 = vmatprep.subr.mxu0 0.0
        %2005 = vmatpush1.msra.mxu0 0.0
        %2006 = vmatprep.subr.mxu0 0.0
        %2007 = vmatpush1.msra.mxu0 0.0
        %2008 = vmatprep.subr.mxu0 0.0
        %2009 = vmatpush1.msra.mxu0 0.0
        %2010 = vmatprep.subr.mxu0 0.0
        %2011 = vmatpush1.msra.mxu0 0.0
        %2012 = vmatprep.subr.mxu0 0.0
        %2013 = vmatpush1.msra.mxu0 0.0
        %2014 = vmatprep.subr.mxu0 0.0
        %2015 = vmatpush1.msra.mxu0 0.0
        %2016 = vmatprep.mubr.f32.mxu0 0.0
        %2017 = vmatmul.mubr.f32.gmra.mrb[0].mxu0 %v204
        %v2018 = vpop.f32.mrb[0].mxu0
        %v2019 = vadd.f32 %v186, %v2018
        %v2020 = vpop.f32.mrb[0].mxu0
        %v2021 = vadd.f32 %v186, %v2020
        %2022 = vmatprep.mubr.f32.mxu0 0.0
        %2023 = vmatmul.mubr.f32.gmra.mrb[0].mxu0 %v206
        %v2024 = vpop.f32.mrb[0].mxu0
        %v2025 = vadd.f32 %v191, %v2024
        %v2026 = vpop.f32.mrb[0].mxu0
        %v2027 = vadd.f32 %v191, %v2026
        %2028 = vmatprep.mubr.f32.mxu0 0.0
        %2029 = vmatmul.mubr.f32.gmra.mrb[0].mxu0 %v208
        %v2030 = vpop.f32.mrb[0].mxu0
        %v2031 = vadd.f32 %v196, %v2030
        %v2032 = vpop.f32.mrb[0].mxu0
        %v2033 = vadd.f32 %v196, %v2032
        %2034 = vmatprep.mubr.f32.mxu0 0.0
        %2035 = vmatmul.mubr.f32.gmra.mrb[0].mxu0 %v210
        %v2036 = vpop.f32.mrb[0].mxu0
        %v2037 = vadd.f32 %v201, %v2036
        %v2038 = vpop.f32.mrb[0].mxu0
        %v2039 = vadd.f32 %v201, %v2038
        %2040 = vdwg.mxu0
        %v2041 = vmax.f32 %v1930, 0.0
        %v2042 = vmax.f32 %v1932, 0.0
        %v2043 = vmax.f32 %v2019, 0.0
        %v2044 = vmax.f32 %v2021, 0.0
        %v2045 = vmax.f32 %v1936, 0.0
        %v2046 = vmax.f32 %v1938, 0.0
        %v2047 = vmax.f32 %v2025, 0.0
        %v2048 = vmax.f32 %v2027, 0.0
        %v2049 = vmax.f32 %v1942, 0.0
        %v2050 = vmax.f32 %v1944, 0.0
        %v2051 = vmax.f32 %v2031, 0.0
        %v2052 = vmax.f32 %v2033, 0.0
        %v2053 = vmax.f32 %v1948, 0.0
        %v2054 = vmax.f32 %v1950, 0.0
        %v2055 = vmax.f32 %v2037, 0.0
        %v2056 = vmax.f32 %v2039, 0.0
        %v2057 = vmul.f32 %v2041, %v421
        %v2058 = vmul.f32 %v2042, %v421
        %v2059 = vmul.f32 %v2043, %v421
        %v2060 = vmul.f32 %v2044, %v421
        %v2061 = vmul.f32 %v2045, %v425
        %v2062 = vmul.f32 %v2046, %v425
        %v2063 = vmul.f32 %v2047, %v425
        %v2064 = vmul.f32 %v2048, %v425
        %v2065 = vmul.f32 %v2049, %v429
        %v2066 = vmul.f32 %v2050, %v429
        %v2067 = vmul.f32 %v2051, %v429
        %v2068 = vmul.f32 %v2052, %v429
        %v2069 = vmul.f32 %v2053, %v433
        %v2070 = vmul.f32 %v2054, %v433
        %v2071 = vmul.f32 %v2055, %v433
        %v2072 = vmul.f32 %v2056, %v433
        %v2073 = vadd.f32 %v2057, %v2061
        %v2074 = vadd.f32 %v2073, %v2065
        %v2075 = vadd.f32 %v2074, %v2069
        %v2076 = vrot.slane %v2075, 4
        %v2077 = vadd.f32 %v2075, %v2076
        %v2078 = vrot.slane %v2077, 2
        %v2079 = vadd.f32 %v2077, %v2078
        %v2080 = vrot.slane %v2079, 1
        %v2081 = vadd.f32 %v2079, %v2080
        %v2082 = vadd.f32 %v2058, %v2062
        %v2083 = vadd.f32 %v2082, %v2066
        %v2084 = vadd.f32 %v2083, %v2070
        %v2085 = vrot.slane %v2084, 4
        %v2086 = vadd.f32 %v2084, %v2085
        %v2087 = vrot.slane %v2086, 2
        %v2088 = vadd.f32 %v2086, %v2087
        %v2089 = vrot.slane %v2088, 1
        %v2090 = vadd.f32 %v2088, %v2089
        %v2091 = vadd.f32 %v2059, %v2063
        %v2092 = vadd.f32 %v2091, %v2067
        %v2093 = vadd.f32 %v2092, %v2071
        %v2094 = vrot.slane %v2093, 4
        %v2095 = vadd.f32 %v2093, %v2094
        %v2096 = vrot.slane %v2095, 2
        %v2097 = vadd.f32 %v2095, %v2096
        %v2098 = vrot.slane %v2097, 1
        %v2099 = vadd.f32 %v2097, %v2098
        %v2100 = vadd.f32 %v2060, %v2064
        %v2101 = vadd.f32 %v2100, %v2068
        %v2102 = vadd.f32 %v2101, %v2072
        %v2103 = vrot.slane %v2102, 4
        %v2104 = vadd.f32 %v2102, %v2103
        %v2105 = vrot.slane %v2104, 2
        %v2106 = vadd.f32 %v2104, %v2105
        %v2107 = vrot.slane %v2106, 1
        %v2108 = vadd.f32 %v2106, %v2107
        %v2109 = vadd.f32 %v2081, %v495
        %v2110 = vadd.f32 %v2090, %v495
        %v2111 = vadd.f32 %v2099, %v495
        %v2112 = vadd.f32 %v2108, %v495
        %v2113 = vxor.u32 %v2109, 2147483648
        %v2114 = vxor.u32 %v2110, 2147483648
        %v2115 = vxor.u32 %v2111, 2147483648
        %v2116 = vxor.u32 %v2112, 2147483648
        %v2117 = vmul.f32 %v2113, 1.442695
        %v2118 = vpow.pop %v2117
        %v2119 = vmul.f32 %v2114, 1.442695
        %v2120 = vpow.pop %v2119
        %v2121 = vmul.f32 %v2115, 1.442695
        %v2122 = vpow.pop %v2121
        %v2123 = vmul.f32 %v2116, 1.442695
        %v2124 = vpow.pop %v2123
        %v2125 = vadd.f32 %v2118, 1.0
        %v2126 = vadd.f32 %v2120, 1.0
        %v2127 = vadd.f32 %v2122, 1.0
        %v2128 = vadd.f32 %v2124, 1.0
        %v2129 = vrcp.pop %v2125
        %v2130 = vmul.f32 1.0, %v2129
        %v2131 = vrcp.pop %v2126
        %v2132 = vmul.f32 1.0, %v2131
        %v2133 = vrcp.pop %v2127
        %v2134 = vmul.f32 1.0, %v2133
        %v2135 = vrcp.pop %v2128
        %v2136 = vmul.f32 1.0, %v2135
        %v2141 = vcombine.low %v2130, %v2132
        %v2142 = vcombine.low %v2134, %v2136
        %v2144 = vunpack.c.l.s4 1966171168
        %v2145 = vunpack.c.0.s8 %v2144
        %v2146 = vlaneseq
        %v2147 = vshrl.u32 %v2146, 7
        %v2148 = vsub.s32 %v2145, %v2147
        %v2149 = vrot.slane %v2141, %v2148
        %v2151 = vunpack.c.l.s4 1966171168
        %v2152 = vunpack.c.0.s8 %v2151
        %v2153 = vlaneseq
        %v2154 = vshrl.u32 %v2153, 7
        %v2155 = vsub.s32 %v2152, %v2154
        %v2156 = vrot.slane %v2142, %v2155
        %v2157 = vcombine.low %v2149, %v2156
        %v2159 = vunpack.c.l.s4 1966171168
        %v2160 = vunpack.c.0.s8 %v2159
        %v2161 = vlaneseq
        %v2162 = vshrl.u32 %v2161, 7
        %v2163 = vsub.s32 %v2160, %v2162
        %v2164 = vrot.slane %v2157, %v2163
        %s2166 = scalar_lea.vmem %s166, 20 [#allocation3]
        %2167 = vst.msk [vmem:[%s2166] sm:$0xf] %vm556, %v2164
        %s2168 = scalar_lea.vmem %s171, 192
        %v2169 = vld [vmem:[%s2168] sm:$0x3f]
        %v2170 = vld [vmem:[%s2168 + $0x8] sm:$0x3f]
        %v2171 = vld [vmem:[%s2168 + $0x10] sm:$0x3f]
        %v2172 = vld [vmem:[%s2168 + $0x18] sm:$0x3f]
        %v2174 = vsel %vm212, %v2169, 0
        %v2177 = vsel %vm212, %v2170, 0
        %v2180 = vsel %vm212, %v2171, 0
        %v2183 = vsel %vm212, %v2172, 0
        %2185 = vmatprep.subr.mxu0 %v2177
        %2186 = vmatpush1.msra.mxu0 %v2174
        %2187 = vmatprep.subr.mxu0 0.0
        %2188 = vmatpush1.msra.mxu0 0.0
        %2189 = vmatprep.subr.mxu0 0.0
        %2190 = vmatpush1.msra.mxu0 0.0
        %2191 = vmatprep.subr.mxu0 0.0
        %2192 = vmatpush1.msra.mxu0 0.0
        %2193 = vmatprep.subr.mxu0 0.0
        %2194 = vmatpush1.msra.mxu0 0.0
        %2195 = vmatprep.subr.mxu0 0.0
        %2196 = vmatpush1.msra.mxu0 0.0
        %2197 = vmatprep.subr.mxu0 0.0
        %2198 = vmatpush1.msra.mxu0 0.0
        %2199 = vmatprep.subr.mxu0 0.0
        %2200 = vmatpush1.msra.mxu0 0.0
        %2201 = vmatprep.subr.mxu0 0.0
        %2202 = vmatpush1.msra.mxu0 0.0
        %2203 = vmatprep.subr.mxu0 0.0
        %2204 = vmatpush1.msra.mxu0 0.0
        %2205 = vmatprep.subr.mxu0 0.0
        %2206 = vmatpush1.msra.mxu0 0.0
        %2207 = vmatprep.subr.mxu0 0.0
        %2208 = vmatpush1.msra.mxu0 0.0
        %2209 = vmatprep.subr.mxu0 0.0
        %2210 = vmatpush1.msra.mxu0 0.0
        %2211 = vmatprep.subr.mxu0 0.0
        %2212 = vmatpush1.msra.mxu0 0.0
        %2213 = vmatprep.subr.mxu0 0.0
        %2214 = vmatpush1.msra.mxu0 0.0
        %2215 = vmatprep.subr.mxu0 0.0
        %2216 = vmatpush1.msra.mxu0 0.0
        %2217 = vmatprep.subr.mxu0 0.0
        %2218 = vmatpush1.msra.mxu0 0.0
        %2219 = vmatprep.subr.mxu0 0.0
        %2220 = vmatpush1.msra.mxu0 0.0
        %2221 = vmatprep.subr.mxu0 0.0
        %2222 = vmatpush1.msra.mxu0 0.0
        %2223 = vmatprep.subr.mxu0 0.0
        %2224 = vmatpush1.msra.mxu0 0.0
        %2225 = vmatprep.subr.mxu0 0.0
        %2226 = vmatpush1.msra.mxu0 0.0
        %2227 = vmatprep.subr.mxu0 0.0
        %2228 = vmatpush1.msra.mxu0 0.0
        %2229 = vmatprep.subr.mxu0 0.0
        %2230 = vmatpush1.msra.mxu0 0.0
        %2231 = vmatprep.subr.mxu0 0.0
        %2232 = vmatpush1.msra.mxu0 0.0
        %2233 = vmatprep.subr.mxu0 0.0
        %2234 = vmatpush1.msra.mxu0 0.0
        %2235 = vmatprep.subr.mxu0 0.0
        %2236 = vmatpush1.msra.mxu0 0.0
        %2237 = vmatprep.subr.mxu0 0.0
        %2238 = vmatpush1.msra.mxu0 0.0
        %2239 = vmatprep.subr.mxu0 0.0
        %2240 = vmatpush1.msra.mxu0 0.0
        %2241 = vmatprep.subr.mxu0 0.0
        %2242 = vmatpush1.msra.mxu0 0.0
        %2243 = vmatprep.subr.mxu0 0.0
        %2244 = vmatpush1.msra.mxu0 0.0
        %2245 = vmatprep.subr.mxu0 0.0
        %2246 = vmatpush1.msra.mxu0 0.0
        %2247 = vmatprep.subr.mxu0 0.0
        %2248 = vmatpush1.msra.mxu0 0.0
        %2249 = vmatprep.mubr.f32.mxu0 0.0
        %2250 = vmatmul.mubr.f32.gmra.mrb[0].mxu0 %v204
        %v2251 = vpop.f32.mrb[0].mxu0
        %v2252 = vadd.f32 %v186, %v2251
        %v2253 = vpop.f32.mrb[0].mxu0
        %v2254 = vadd.f32 %v186, %v2253
        %2255 = vmatprep.mubr.f32.mxu0 0.0
        %2256 = vmatmul.mubr.f32.gmra.mrb[0].mxu0 %v206
        %v2257 = vpop.f32.mrb[0].mxu0
        %v2258 = vadd.f32 %v191, %v2257
        %v2259 = vpop.f32.mrb[0].mxu0
        %v2260 = vadd.f32 %v191, %v2259
        %2261 = vmatprep.mubr.f32.mxu0 0.0
        %2262 = vmatmul.mubr.f32.gmra.mrb[0].mxu0 %v208
        %v2263 = vpop.f32.mrb[0].mxu0
        %v2264 = vadd.f32 %v196, %v2263
        %v2265 = vpop.f32.mrb[0].mxu0
        %v2266 = vadd.f32 %v196, %v2265
        %2267 = vmatprep.mubr.f32.mxu0 0.0
        %2268 = vmatmul.mubr.f32.gmra.mrb[0].mxu0 %v210
        %v2269 = vpop.f32.mrb[0].mxu0
        %v2270 = vadd.f32 %v201, %v2269
        %v2271 = vpop.f32.mrb[0].mxu0
        %v2272 = vadd.f32 %v201, %v2271
        %2273 = vdwg.mxu0
        %2274 = vmatprep.subr.mxu0 %v2183
        %2275 = vmatpush1.msra.mxu0 %v2180
        %2276 = vmatprep.subr.mxu0 0.0
        %2277 = vmatpush1.msra.mxu0 0.0
        %2278 = vmatprep.subr.mxu0 0.0
        %2279 = vmatpush1.msra.mxu0 0.0
        %2280 = vmatprep.subr.mxu0 0.0
        %2281 = vmatpush1.msra.mxu0 0.0
        %2282 = vmatprep.subr.mxu0 0.0
        %2283 = vmatpush1.msra.mxu0 0.0
        %2284 = vmatprep.subr.mxu0 0.0
        %2285 = vmatpush1.msra.mxu0 0.0
        %2286 = vmatprep.subr.mxu0 0.0
        %2287 = vmatpush1.msra.mxu0 0.0
        %2288 = vmatprep.subr.mxu0 0.0
        %2289 = vmatpush1.msra.mxu0 0.0
        %2290 = vmatprep.subr.mxu0 0.0
        %2291 = vmatpush1.msra.mxu0 0.0
        %2292 = vmatprep.subr.mxu0 0.0
        %2293 = vmatpush1.msra.mxu0 0.0
        %2294 = vmatprep.subr.mxu0 0.0
        %2295 = vmatpush1.msra.mxu0 0.0
        %2296 = vmatprep.subr.mxu0 0.0
        %2297 = vmatpush1.msra.mxu0 0.0
        %2298 = vmatprep.subr.mxu0 0.0
        %2299 = vmatpush1.msra.mxu0 0.0
        %2300 = vmatprep.subr.mxu0 0.0
        %2301 = vmatpush1.msra.mxu0 0.0
        %2302 = vmatprep.subr.mxu0 0.0
        %2303 = vmatpush1.msra.mxu0 0.0
        %2304 = vmatprep.subr.mxu0 0.0
        %2305 = vmatpush1.msra.mxu0 0.0
        %2306 = vmatprep.subr.mxu0 0.0
        %2307 = vmatpush1.msra.mxu0 0.0
        %2308 = vmatprep.subr.mxu0 0.0
        %2309 = vmatpush1.msra.mxu0 0.0
        %2310 = vmatprep.subr.mxu0 0.0
        %2311 = vmatpush1.msra.mxu0 0.0
        %2312 = vmatprep.subr.mxu0 0.0
        %2313 = vmatpush1.msra.mxu0 0.0
        %2314 = vmatprep.subr.mxu0 0.0
        %2315 = vmatpush1.msra.mxu0 0.0
        %2316 = vmatprep.subr.mxu0 0.0
        %2317 = vmatpush1.msra.mxu0 0.0
        %2318 = vmatprep.subr.mxu0 0.0
        %2319 = vmatpush1.msra.mxu0 0.0
        %2320 = vmatprep.subr.mxu0 0.0
        %2321 = vmatpush1.msra.mxu0 0.0
        %2322 = vmatprep.subr.mxu0 0.0
        %2323 = vmatpush1.msra.mxu0 0.0
        %2324 = vmatprep.subr.mxu0 0.0
        %2325 = vmatpush1.msra.mxu0 0.0
        %2326 = vmatprep.subr.mxu0 0.0
        %2327 = vmatpush1.msra.mxu0 0.0
        %2328 = vmatprep.subr.mxu0 0.0
        %2329 = vmatpush1.msra.mxu0 0.0
        %2330 = vmatprep.subr.mxu0 0.0
        %2331 = vmatpush1.msra.mxu0 0.0
        %2332 = vmatprep.subr.mxu0 0.0
        %2333 = vmatpush1.msra.mxu0 0.0
        %2334 = vmatprep.subr.mxu0 0.0
        %2335 = vmatpush1.msra.mxu0 0.0
        %2336 = vmatprep.subr.mxu0 0.0
        %2337 = vmatpush1.msra.mxu0 0.0
        %2338 = vmatprep.mubr.f32.mxu0 0.0
        %2339 = vmatmul.mubr.f32.gmra.mrb[0].mxu0 %v204
        %v2340 = vpop.f32.mrb[0].mxu0
        %v2341 = vadd.f32 %v186, %v2340
        %v2342 = vpop.f32.mrb[0].mxu0
        %v2343 = vadd.f32 %v186, %v2342
        %2344 = vmatprep.mubr.f32.mxu0 0.0
        %2345 = vmatmul.mubr.f32.gmra.mrb[0].mxu0 %v206
        %v2346 = vpop.f32.mrb[0].mxu0
        %v2347 = vadd.f32 %v191, %v2346
        %v2348 = vpop.f32.mrb[0].mxu0
        %v2349 = vadd.f32 %v191, %v2348
        %2350 = vmatprep.mubr.f32.mxu0 0.0
        %2351 = vmatmul.mubr.f32.gmra.mrb[0].mxu0 %v208
        %v2352 = vpop.f32.mrb[0].mxu0
        %v2353 = vadd.f32 %v196, %v2352
        %v2354 = vpop.f32.mrb[0].mxu0
        %v2355 = vadd.f32 %v196, %v2354
        %2356 = vmatprep.mubr.f32.mxu0 0.0
        %2357 = vmatmul.mubr.f32.gmra.mrb[0].mxu0 %v210
        %v2358 = vpop.f32.mrb[0].mxu0
        %v2359 = vadd.f32 %v201, %v2358
        %v2360 = vpop.f32.mrb[0].mxu0
        %v2361 = vadd.f32 %v201, %v2360
        %2362 = vdwg.mxu0
        %v2363 = vmax.f32 %v2252, 0.0
        %v2364 = vmax.f32 %v2254, 0.0
        %v2365 = vmax.f32 %v2341, 0.0
        %v2366 = vmax.f32 %v2343, 0.0
        %v2367 = vmax.f32 %v2258, 0.0
        %v2368 = vmax.f32 %v2260, 0.0
        %v2369 = vmax.f32 %v2347, 0.0
        %v2370 = vmax.f32 %v2349, 0.0
        %v2371 = vmax.f32 %v2264, 0.0
        %v2372 = vmax.f32 %v2266, 0.0
        %v2373 = vmax.f32 %v2353, 0.0
        %v2374 = vmax.f32 %v2355, 0.0
        %v2375 = vmax.f32 %v2270, 0.0
        %v2376 = vmax.f32 %v2272, 0.0
        %v2377 = vmax.f32 %v2359, 0.0
        %v2378 = vmax.f32 %v2361, 0.0
        %v2379 = vmul.f32 %v2363, %v421
        %v2380 = vmul.f32 %v2364, %v421
        %v2381 = vmul.f32 %v2365, %v421
        %v2382 = vmul.f32 %v2366, %v421
        %v2383 = vmul.f32 %v2367, %v425
        %v2384 = vmul.f32 %v2368, %v425
        %v2385 = vmul.f32 %v2369, %v425
        %v2386 = vmul.f32 %v2370, %v425
        %v2387 = vmul.f32 %v2371, %v429
        %v2388 = vmul.f32 %v2372, %v429
        %v2389 = vmul.f32 %v2373, %v429
        %v2390 = vmul.f32 %v2374, %v429
        %v2391 = vmul.f32 %v2375, %v433
        %v2392 = vmul.f32 %v2376, %v433
        %v2393 = vmul.f32 %v2377, %v433
        %v2394 = vmul.f32 %v2378, %v433
        %v2395 = vadd.f32 %v2379, %v2383
        %v2396 = vadd.f32 %v2395, %v2387
        %v2397 = vadd.f32 %v2396, %v2391
        %v2398 = vrot.slane %v2397, 4
        %v2399 = vadd.f32 %v2397, %v2398
        %v2400 = vrot.slane %v2399, 2
        %v2401 = vadd.f32 %v2399, %v2400
        %v2402 = vrot.slane %v2401, 1
        %v2403 = vadd.f32 %v2401, %v2402
        %v2404 = vadd.f32 %v2380, %v2384
        %v2405 = vadd.f32 %v2404, %v2388
        %v2406 = vadd.f32 %v2405, %v2392
        %v2407 = vrot.slane %v2406, 4
        %v2408 = vadd.f32 %v2406, %v2407
        %v2409 = vrot.slane %v2408, 2
        %v2410 = vadd.f32 %v2408, %v2409
        %v2411 = vrot.slane %v2410, 1
        %v2412 = vadd.f32 %v2410, %v2411
        %v2413 = vadd.f32 %v2381, %v2385
        %v2414 = vadd.f32 %v2413, %v2389
        %v2415 = vadd.f32 %v2414, %v2393
        %v2416 = vrot.slane %v2415, 4
        %v2417 = vadd.f32 %v2415, %v2416
        %v2418 = vrot.slane %v2417, 2
        %v2419 = vadd.f32 %v2417, %v2418
        %v2420 = vrot.slane %v2419, 1
        %v2421 = vadd.f32 %v2419, %v2420
        %v2422 = vadd.f32 %v2382, %v2386
        %v2423 = vadd.f32 %v2422, %v2390
        %v2424 = vadd.f32 %v2423, %v2394
        %v2425 = vrot.slane %v2424, 4
        %v2426 = vadd.f32 %v2424, %v2425
        %v2427 = vrot.slane %v2426, 2
        %v2428 = vadd.f32 %v2426, %v2427
        %v2429 = vrot.slane %v2428, 1
        %v2430 = vadd.f32 %v2428, %v2429
        %v2431 = vadd.f32 %v2403, %v495
        %v2432 = vadd.f32 %v2412, %v495
        %v2433 = vadd.f32 %v2421, %v495
        %v2434 = vadd.f32 %v2430, %v495
        %v2435 = vxor.u32 %v2431, 2147483648
        %v2436 = vxor.u32 %v2432, 2147483648
        %v2437 = vxor.u32 %v2433, 2147483648
        %v2438 = vxor.u32 %v2434, 2147483648
        %v2439 = vmul.f32 %v2435, 1.442695
        %v2440 = vpow.pop %v2439
        %v2441 = vmul.f32 %v2436, 1.442695
        %v2442 = vpow.pop %v2441
        %v2443 = vmul.f32 %v2437, 1.442695
        %v2444 = vpow.pop %v2443
        %v2445 = vmul.f32 %v2438, 1.442695
        %v2446 = vpow.pop %v2445
        %v2447 = vadd.f32 %v2440, 1.0
        %v2448 = vadd.f32 %v2442, 1.0
        %v2449 = vadd.f32 %v2444, 1.0
        %v2450 = vadd.f32 %v2446, 1.0
        %v2451 = vrcp.pop %v2447
        %v2452 = vmul.f32 1.0, %v2451
        %v2453 = vrcp.pop %v2448
        %v2454 = vmul.f32 1.0, %v2453
        %v2455 = vrcp.pop %v2449
        %v2456 = vmul.f32 1.0, %v2455
        %v2457 = vrcp.pop %v2450
        %v2458 = vmul.f32 1.0, %v2457
        %v2463 = vcombine.low %v2452, %v2454
        %v2464 = vcombine.low %v2456, %v2458
        %v2466 = vunpack.c.l.s4 1966171168
        %v2467 = vunpack.c.0.s8 %v2466
        %v2468 = vlaneseq
        %v2469 = vshrl.u32 %v2468, 7
        %v2470 = vsub.s32 %v2467, %v2469
        %v2471 = vrot.slane %v2463, %v2470
        %v2473 = vunpack.c.l.s4 1966171168
        %v2474 = vunpack.c.0.s8 %v2473
        %v2475 = vlaneseq
        %v2476 = vshrl.u32 %v2475, 7
        %v2477 = vsub.s32 %v2474, %v2476
        %v2478 = vrot.slane %v2464, %v2477
        %v2479 = vcombine.low %v2471, %v2478
        %v2481 = vunpack.c.l.s4 1966171168
        %v2482 = vunpack.c.0.s8 %v2481
        %v2483 = vlaneseq
        %v2484 = vshrl.u32 %v2483, 7
        %v2485 = vsub.s32 %v2482, %v2484
        %v2486 = vrot.slane %v2479, %v2485
        %s2488 = scalar_lea.vmem %s166, 24 [#allocation3]
        %2489 = vst.msk [vmem:[%s2488] sm:$0xf] %vm556, %v2486
        %s2490 = scalar_lea.vmem %s171, 224
        %v2491 = vld [vmem:[%s2490] sm:$0x3f]
        %v2492 = vld [vmem:[%s2490 + $0x8] sm:$0x3f]
        %v2493 = vld [vmem:[%s2490 + $0x10] sm:$0x3f]
        %v2494 = vld [vmem:[%s2490 + $0x18] sm:$0x3f]
        %v2496 = vsel %vm212, %v2491, 0
        %v2499 = vsel %vm212, %v2492, 0
        %v2502 = vsel %vm212, %v2493, 0
        %v2505 = vsel %vm212, %v2494, 0
        %2507 = vmatprep.subr.mxu0 %v2499
        %2508 = vmatpush1.msra.mxu0 %v2496
        %2509 = vmatprep.subr.mxu0 0.0
        %2510 = vmatpush1.msra.mxu0 0.0
        %2511 = vmatprep.subr.mxu0 0.0
        %2512 = vmatpush1.msra.mxu0 0.0
        %2513 = vmatprep.subr.mxu0 0.0
        %2514 = vmatpush1.msra.mxu0 0.0
        %2515 = vmatprep.subr.mxu0 0.0
        %2516 = vmatpush1.msra.mxu0 0.0
        %2517 = vmatprep.subr.mxu0 0.0
        %2518 = vmatpush1.msra.mxu0 0.0
        %2519 = vmatprep.subr.mxu0 0.0
        %2520 = vmatpush1.msra.mxu0 0.0
        %2521 = vmatprep.subr.mxu0 0.0
        %2522 = vmatpush1.msra.mxu0 0.0
        %2523 = vmatprep.subr.mxu0 0.0
        %2524 = vmatpush1.msra.mxu0 0.0
        %2525 = vmatprep.subr.mxu0 0.0
        %2526 = vmatpush1.msra.mxu0 0.0
        %2527 = vmatprep.subr.mxu0 0.0
        %2528 = vmatpush1.msra.mxu0 0.0
        %2529 = vmatprep.subr.mxu0 0.0
        %2530 = vmatpush1.msra.mxu0 0.0
        %2531 = vmatprep.subr.mxu0 0.0
        %2532 = vmatpush1.msra.mxu0 0.0
        %2533 = vmatprep.subr.mxu0 0.0
        %2534 = vmatpush1.msra.mxu0 0.0
        %2535 = vmatprep.subr.mxu0 0.0
        %2536 = vmatpush1.msra.mxu0 0.0
        %2537 = vmatprep.subr.mxu0 0.0
        %2538 = vmatpush1.msra.mxu0 0.0
        %2539 = vmatprep.subr.mxu0 0.0
        %2540 = vmatpush1.msra.mxu0 0.0
        %2541 = vmatprep.subr.mxu0 0.0
        %2542 = vmatpush1.msra.mxu0 0.0
        %2543 = vmatprep.subr.mxu0 0.0
        %2544 = vmatpush1.msra.mxu0 0.0
        %2545 = vmatprep.subr.mxu0 0.0
        %2546 = vmatpush1.msra.mxu0 0.0
        %2547 = vmatprep.subr.mxu0 0.0
        %2548 = vmatpush1.msra.mxu0 0.0
        %2549 = vmatprep.subr.mxu0 0.0
        %2550 = vmatpush1.msra.mxu0 0.0
        %2551 = vmatprep.subr.mxu0 0.0
        %2552 = vmatpush1.msra.mxu0 0.0
        %2553 = vmatprep.subr.mxu0 0.0
        %2554 = vmatpush1.msra.mxu0 0.0
        %2555 = vmatprep.subr.mxu0 0.0
        %2556 = vmatpush1.msra.mxu0 0.0
        %2557 = vmatprep.subr.mxu0 0.0
        %2558 = vmatpush1.msra.mxu0 0.0
        %2559 = vmatprep.subr.mxu0 0.0
        %2560 = vmatpush1.msra.mxu0 0.0
        %2561 = vmatprep.subr.mxu0 0.0
        %2562 = vmatpush1.msra.mxu0 0.0
        %2563 = vmatprep.subr.mxu0 0.0
        %2564 = vmatpush1.msra.mxu0 0.0
        %2565 = vmatprep.subr.mxu0 0.0
        %2566 = vmatpush1.msra.mxu0 0.0
        %2567 = vmatprep.subr.mxu0 0.0
        %2568 = vmatpush1.msra.mxu0 0.0
        %2569 = vmatprep.subr.mxu0 0.0
        %2570 = vmatpush1.msra.mxu0 0.0
        %2571 = vmatprep.mubr.f32.mxu0 0.0
        %2572 = vmatmul.mubr.f32.gmra.mrb[0].mxu0 %v204
        %v2573 = vpop.f32.mrb[0].mxu0
        %v2574 = vadd.f32 %v186, %v2573
        %v2575 = vpop.f32.mrb[0].mxu0
        %v2576 = vadd.f32 %v186, %v2575
        %2577 = vmatprep.mubr.f32.mxu0 0.0
        %2578 = vmatmul.mubr.f32.gmra.mrb[0].mxu0 %v206
        %v2579 = vpop.f32.mrb[0].mxu0
        %v2580 = vadd.f32 %v191, %v2579
        %v2581 = vpop.f32.mrb[0].mxu0
        %v2582 = vadd.f32 %v191, %v2581
        %2583 = vmatprep.mubr.f32.mxu0 0.0
        %2584 = vmatmul.mubr.f32.gmra.mrb[0].mxu0 %v208
        %v2585 = vpop.f32.mrb[0].mxu0
        %v2586 = vadd.f32 %v196, %v2585
        %v2587 = vpop.f32.mrb[0].mxu0
        %v2588 = vadd.f32 %v196, %v2587
        %2589 = vmatprep.mubr.f32.mxu0 0.0
        %2590 = vmatmul.mubr.f32.gmra.mrb[0].mxu0 %v210
        %v2591 = vpop.f32.mrb[0].mxu0
        %v2592 = vadd.f32 %v201, %v2591
        %v2593 = vpop.f32.mrb[0].mxu0
        %v2594 = vadd.f32 %v201, %v2593
        %2595 = vdwg.mxu0
        %2596 = vmatprep.subr.mxu0 %v2505
        %2597 = vmatpush1.msra.mxu0 %v2502
        %2598 = vmatprep.subr.mxu0 0.0
        %2599 = vmatpush1.msra.mxu0 0.0
        %2600 = vmatprep.subr.mxu0 0.0
        %2601 = vmatpush1.msra.mxu0 0.0
        %2602 = vmatprep.subr.mxu0 0.0
        %2603 = vmatpush1.msra.mxu0 0.0
        %2604 = vmatprep.subr.mxu0 0.0
        %2605 = vmatpush1.msra.mxu0 0.0
        %2606 = vmatprep.subr.mxu0 0.0
        %2607 = vmatpush1.msra.mxu0 0.0
        %2608 = vmatprep.subr.mxu0 0.0
        %2609 = vmatpush1.msra.mxu0 0.0
        %2610 = vmatprep.subr.mxu0 0.0
        %2611 = vmatpush1.msra.mxu0 0.0
        %2612 = vmatprep.subr.mxu0 0.0
        %2613 = vmatpush1.msra.mxu0 0.0
        %2614 = vmatprep.subr.mxu0 0.0
        %2615 = vmatpush1.msra.mxu0 0.0
        %2616 = vmatprep.subr.mxu0 0.0
        %2617 = vmatpush1.msra.mxu0 0.0
        %2618 = vmatprep.subr.mxu0 0.0
        %2619 = vmatpush1.msra.mxu0 0.0
        %2620 = vmatprep.subr.mxu0 0.0
        %2621 = vmatpush1.msra.mxu0 0.0
        %2622 = vmatprep.subr.mxu0 0.0
        %2623 = vmatpush1.msra.mxu0 0.0
        %2624 = vmatprep.subr.mxu0 0.0
        %2625 = vmatpush1.msra.mxu0 0.0
        %2626 = vmatprep.subr.mxu0 0.0
        %2627 = vmatpush1.msra.mxu0 0.0
        %2628 = vmatprep.subr.mxu0 0.0
        %2629 = vmatpush1.msra.mxu0 0.0
        %2630 = vmatprep.subr.mxu0 0.0
        %2631 = vmatpush1.msra.mxu0 0.0
        %2632 = vmatprep.subr.mxu0 0.0
        %2633 = vmatpush1.msra.mxu0 0.0
        %2634 = vmatprep.subr.mxu0 0.0
        %2635 = vmatpush1.msra.mxu0 0.0
        %2636 = vmatprep.subr.mxu0 0.0
        %2637 = vmatpush1.msra.mxu0 0.0
        %2638 = vmatprep.subr.mxu0 0.0
        %2639 = vmatpush1.msra.mxu0 0.0
        %2640 = vmatprep.subr.mxu0 0.0
        %2641 = vmatpush1.msra.mxu0 0.0
        %2642 = vmatprep.subr.mxu0 0.0
        %2643 = vmatpush1.msra.mxu0 0.0
        %2644 = vmatprep.subr.mxu0 0.0
        %2645 = vmatpush1.msra.mxu0 0.0
        %2646 = vmatprep.subr.mxu0 0.0
        %2647 = vmatpush1.msra.mxu0 0.0
        %2648 = vmatprep.subr.mxu0 0.0
        %2649 = vmatpush1.msra.mxu0 0.0
        %2650 = vmatprep.subr.mxu0 0.0
        %2651 = vmatpush1.msra.mxu0 0.0
        %2652 = vmatprep.subr.mxu0 0.0
        %2653 = vmatpush1.msra.mxu0 0.0
        %2654 = vmatprep.subr.mxu0 0.0
        %2655 = vmatpush1.msra.mxu0 0.0
        %2656 = vmatprep.subr.mxu0 0.0
        %2657 = vmatpush1.msra.mxu0 0.0
        %2658 = vmatprep.subr.mxu0 0.0
        %2659 = vmatpush1.msra.mxu0 0.0
        %2660 = vmatprep.mubr.f32.mxu0 0.0
        %2661 = vmatmul.mubr.f32.gmra.mrb[0].mxu0 %v204
        %v2662 = vpop.f32.mrb[0].mxu0
        %v2663 = vadd.f32 %v186, %v2662
        %v2664 = vpop.f32.mrb[0].mxu0
        %v2665 = vadd.f32 %v186, %v2664
        %2666 = vmatprep.mubr.f32.mxu0 0.0
        %2667 = vmatmul.mubr.f32.gmra.mrb[0].mxu0 %v206
        %v2668 = vpop.f32.mrb[0].mxu0
        %v2669 = vadd.f32 %v191, %v2668
        %v2670 = vpop.f32.mrb[0].mxu0
        %v2671 = vadd.f32 %v191, %v2670
        %2672 = vmatprep.mubr.f32.mxu0 0.0
        %2673 = vmatmul.mubr.f32.gmra.mrb[0].mxu0 %v208
        %v2674 = vpop.f32.mrb[0].mxu0
        %v2675 = vadd.f32 %v196, %v2674
        %v2676 = vpop.f32.mrb[0].mxu0
        %v2677 = vadd.f32 %v196, %v2676
        %2678 = vmatprep.mubr.f32.mxu0 0.0
        %2679 = vmatmul.mubr.f32.gmra.mrb[0].mxu0 %v210
        %v2680 = vpop.f32.mrb[0].mxu0
        %v2681 = vadd.f32 %v201, %v2680
        %v2682 = vpop.f32.mrb[0].mxu0
        %v2683 = vadd.f32 %v201, %v2682
        %2684 = vdwg.mxu0
        %v2685 = vmax.f32 %v2574, 0.0
        %v2686 = vmax.f32 %v2576, 0.0
        %v2687 = vmax.f32 %v2663, 0.0
        %v2688 = vmax.f32 %v2665, 0.0
        %v2689 = vmax.f32 %v2580, 0.0
        %v2690 = vmax.f32 %v2582, 0.0
        %v2691 = vmax.f32 %v2669, 0.0
        %v2692 = vmax.f32 %v2671, 0.0
        %v2693 = vmax.f32 %v2586, 0.0
        %v2694 = vmax.f32 %v2588, 0.0
        %v2695 = vmax.f32 %v2675, 0.0
        %v2696 = vmax.f32 %v2677, 0.0
        %v2697 = vmax.f32 %v2592, 0.0
        %v2698 = vmax.f32 %v2594, 0.0
        %v2699 = vmax.f32 %v2681, 0.0
        %v2700 = vmax.f32 %v2683, 0.0
        %v2701 = vmul.f32 %v2685, %v421
        %v2702 = vmul.f32 %v2686, %v421
        %v2703 = vmul.f32 %v2687, %v421
        %v2704 = vmul.f32 %v2688, %v421
        %v2705 = vmul.f32 %v2689, %v425
        %v2706 = vmul.f32 %v2690, %v425
        %v2707 = vmul.f32 %v2691, %v425
        %v2708 = vmul.f32 %v2692, %v425
        %v2709 = vmul.f32 %v2693, %v429
        %v2710 = vmul.f32 %v2694, %v429
        %v2711 = vmul.f32 %v2695, %v429
        %v2712 = vmul.f32 %v2696, %v429
        %v2713 = vmul.f32 %v2697, %v433
        %v2714 = vmul.f32 %v2698, %v433
        %v2715 = vmul.f32 %v2699, %v433
        %v2716 = vmul.f32 %v2700, %v433
        %v2717 = vadd.f32 %v2701, %v2705
        %v2718 = vadd.f32 %v2717, %v2709
        %v2719 = vadd.f32 %v2718, %v2713
        %v2720 = vrot.slane %v2719, 4
        %v2721 = vadd.f32 %v2719, %v2720
        %v2722 = vrot.slane %v2721, 2
        %v2723 = vadd.f32 %v2721, %v2722
        %v2724 = vrot.slane %v2723, 1
        %v2725 = vadd.f32 %v2723, %v2724
        %v2726 = vadd.f32 %v2702, %v2706
        %v2727 = vadd.f32 %v2726, %v2710
        %v2728 = vadd.f32 %v2727, %v2714
        %v2729 = vrot.slane %v2728, 4
        %v2730 = vadd.f32 %v2728, %v2729
        %v2731 = vrot.slane %v2730, 2
        %v2732 = vadd.f32 %v2730, %v2731
        %v2733 = vrot.slane %v2732, 1
        %v2734 = vadd.f32 %v2732, %v2733
        %v2735 = vadd.f32 %v2703, %v2707
        %v2736 = vadd.f32 %v2735, %v2711
        %v2737 = vadd.f32 %v2736, %v2715
        %v2738 = vrot.slane %v2737, 4
        %v2739 = vadd.f32 %v2737, %v2738
        %v2740 = vrot.slane %v2739, 2
        %v2741 = vadd.f32 %v2739, %v2740
        %v2742 = vrot.slane %v2741, 1
        %v2743 = vadd.f32 %v2741, %v2742
        %v2744 = vadd.f32 %v2704, %v2708
        %v2745 = vadd.f32 %v2744, %v2712
        %v2746 = vadd.f32 %v2745, %v2716
        %v2747 = vrot.slane %v2746, 4
        %v2748 = vadd.f32 %v2746, %v2747
        %v2749 = vrot.slane %v2748, 2
        %v2750 = vadd.f32 %v2748, %v2749
        %v2751 = vrot.slane %v2750, 1
        %v2752 = vadd.f32 %v2750, %v2751
        %v2753 = vadd.f32 %v2725, %v495
        %v2754 = vadd.f32 %v2734, %v495
        %v2755 = vadd.f32 %v2743, %v495
        %v2756 = vadd.f32 %v2752, %v495
        %v2757 = vxor.u32 %v2753, 2147483648
        %v2758 = vxor.u32 %v2754, 2147483648
        %v2759 = vxor.u32 %v2755, 2147483648
        %v2760 = vxor.u32 %v2756, 2147483648
        %v2761 = vmul.f32 %v2757, 1.442695
        %v2762 = vpow.pop %v2761
        %v2763 = vmul.f32 %v2758, 1.442695
        %v2764 = vpow.pop %v2763
        %v2765 = vmul.f32 %v2759, 1.442695
        %v2766 = vpow.pop %v2765
        %v2767 = vmul.f32 %v2760, 1.442695
        %v2768 = vpow.pop %v2767
        %v2769 = vadd.f32 %v2762, 1.0
        %v2770 = vadd.f32 %v2764, 1.0
        %v2771 = vadd.f32 %v2766, 1.0
        %v2772 = vadd.f32 %v2768, 1.0
        %v2773 = vrcp.pop %v2769
        %v2774 = vmul.f32 1.0, %v2773
        %v2775 = vrcp.pop %v2770
        %v2776 = vmul.f32 1.0, %v2775
        %v2777 = vrcp.pop %v2771
        %v2778 = vmul.f32 1.0, %v2777
        %v2779 = vrcp.pop %v2772
        %v2780 = vmul.f32 1.0, %v2779
        %v2785 = vcombine.low %v2774, %v2776
        %v2786 = vcombine.low %v2778, %v2780
        %v2788 = vunpack.c.l.s4 1966171168
        %v2789 = vunpack.c.0.s8 %v2788
        %v2790 = vlaneseq
        %v2791 = vshrl.u32 %v2790, 7
        %v2792 = vsub.s32 %v2789, %v2791
        %v2793 = vrot.slane %v2785, %v2792
        %v2795 = vunpack.c.l.s4 1966171168
        %v2796 = vunpack.c.0.s8 %v2795
        %v2797 = vlaneseq
        %v2798 = vshrl.u32 %v2797, 7
        %v2799 = vsub.s32 %v2796, %v2798
        %v2800 = vrot.slane %v2786, %v2799
        %v2801 = vcombine.low %v2793, %v2800
        %v2803 = vunpack.c.l.s4 1966171168
        %v2804 = vunpack.c.0.s8 %v2803
        %v2805 = vlaneseq
        %v2806 = vshrl.u32 %v2805, 7
        %v2807 = vsub.s32 %v2804, %v2806
        %v2808 = vrot.slane %v2801, %v2807
        %s2810 = scalar_lea.vmem %s166, 28 [#allocation3]
        %2811 = vst.msk [vmem:[%s2810] sm:$0xf] %vm556, %v2808
        %s2812 = sand.u32 %s95, 1
        %s2813 = scalar_lea.sflag [#allocation4], %s2812
        %s2814 = sand.u32 %s95, 1
        %s2815 = smul.addr %s2814, 32
        %s2816 = scalar_lea.vmem [#allocation3], %s2815
        // Predicated region
        $region33: #{d_transformation_forward.1} parent=31 // pred_check
          %p2817 = pneg %p105
        $region34: #{d_transformation_forward.1} parent=31 // pred_check_branch
          %2819 = sbr.rel (%p2817) target = $region36
        $region35: #{d_transformation_forward.1} parent=31 // pred_region
          %s2820 = smul.u32 32, %s19
          %s2822 = ssub.s32 512, 512
          %2823 = vsyncadd %s2813, %s2822
          %s2824 = smul.addr %s2820, 16
          %s2825 = scalar_lea.hbm %s3, %s2824
          %s2827 = sshll.u32 %s2816, 4
          %s2828 = int_to_ptr.vmem [resolvable:$true] %s2827
          %2830 = dma.vmem_to_hbm [thread:$0]  %s2828, 512, %s2825, %s2813
        $region36: #{d_transformation_forward.1} parent=31 // pred_fallthru
          _
      $region32: #{d_transformation_forward.1} parent=5 // pred_fallthru
        _
      %p2831 = scmp.le.s32.totalorder 2, %s14
      // Predicated region
      $region37: #{d_transformation_forward.1} parent=5 // pred_check
        %p2832 = pneg %p2831
      $region38: #{d_transformation_forward.1} parent=5 // pred_check_branch
        %2834 = sbr.rel (%p2832) target = $region40
      $region39: #{d_transformation_forward.1} parent=5 // pred_region
        %s2835 = ssub.s32 %s14, 2
        // Predicated region
        $region41: #{d_transformation_forward.1} parent=39 // pred_check
          %p2836 = pneg %p111
        $region42: #{d_transformation_forward.1} parent=39 // pred_check_branch
          %2838 = sbr.rel (%p2836) target = $region44
        $region43: #{d_transformation_forward.1} parent=39 // pred_region
          %s2839 = sand.u32 %s96, 1
          %s2840 = scalar_lea.sflag [#allocation4], %s2839
          %s2841 = sand.u32 %s96, 1
          %s2842 = smul.addr %s2841, 32
          %s2843 = scalar_lea.vmem [#allocation3], %s2842
          %2844 = dma.done %s2840, 512
        $region44: #{d_transformation_forward.1} parent=39 // pred_fallthru
          _
      $region40: #{d_transformation_forward.1} parent=5 // pred_fallthru
        _
    $region6: #{d_transformation_forward.1} parent=1 // loop_footer
      %s18 = sadd.s32 1, %s14
    $region7: #{d_transformation_forward.1} parent=1 // loop_footer_branch
      %13 = sbr.rel target = $region3
    $region8: #{d_transformation_forward.1} parent=1 // loop_exit
      _
    %2845 = vsyncpa [#allocation4], 1
    %s2846 = scalar_lea.sflag [#allocation4], 1
    %2847 = vsyncpa %s2846, 1

</llo_original>
